<compile_context>
chip_gen: v7x
topology: tpu7x:2x2x1
jax: 0.10.0
libtpu: 0.0.40
codegen_flags: <defaults>
</compile_context>

<pallas_src>
import functools

import jax
import jax.numpy as jnp
from jax.experimental import pallas as pl
from jax.experimental.pallas import tpu as pltpu


def lstm_classifier_kernel(
    x_ref,       # (B, T, D)
    w_ih_ref,    # (D, 4H)
    w_hh_ref,    # (H, 4H)
    b_ref,       # (1, 4H)   bias_ih + bias_hh
    fc1_w_ref,   # (H, F1)
    fc1_b_ref,   # (1, F1)
    fc2_w_ref,   # (F1, C)
    fc2_b_ref,   # (1, C)
    out_ref,     # (B, C)
):
    B, T, D = x_ref.shape
    H = w_hh_ref.shape[0]

    # ---- Hoisted, batched input projection (independent of the recurrence) ----
    x = x_ref[...]                                        # (B, T, D)
    xw = (
        jnp.dot(x.reshape(B * T, D), w_ih_ref[...],
                preferred_element_type=jnp.float32)
        + b_ref[...]
    )                                                     # (B*T, 4H)
    xw = xw.reshape(B, T, 4 * H)                          # time indexed statically below

    w_hh = w_hh_ref[...]                                  # keep resident in vregs/VMEM

    # ---- Recurrence: fully unrolled at trace time (T is small & static). ----
    # Static time indices => static slices; scheduler sees the whole chain.
    h = jnp.zeros((B, H), jnp.float32)
    c = jnp.zeros((B, H), jnp.float32)
    for t in range(T):
        gates = xw[:, t, :] + jnp.dot(h, w_hh, preferred_element_type=jnp.float32)
        sg = jax.nn.sigmoid(gates)    # one full-width EUP dispatch
        th = jnp.tanh(gates)          # one full-width EUP dispatch
        i_g = sg[:, 0 * H:1 * H]
        f_g = sg[:, 1 * H:2 * H]
        g_g = th[:, 2 * H:3 * H]
        o_g = sg[:, 3 * H:4 * H]
        c = f_g * c + i_g * g_g
        h = o_g * jnp.tanh(c)

    # ---- Fused FC head on the final hidden state (out[:, -1, :] in PyTorch) ----
    z = jnp.maximum(h, 0.0)                                                   # ReLU
    z = jnp.maximum(
        jnp.dot(z, fc1_w_ref[...], preferred_element_type=jnp.float32)
        + fc1_b_ref[...],
        0.0,
    )                                                                         # Linear + ReLU
    logits = (
        jnp.dot(z, fc2_w_ref[...], preferred_element_type=jnp.float32)
        + fc2_b_ref[...]
    )                                                                         # Linear(32, C)
    out_ref[...] = logits.astype(out_ref.dtype)


@functools.partial(jax.jit)
def lstm_classifier_forward(x, params):
    B, T, D = x.shape
    C = params["fc2_w_t"].shape[1]

    vmem = pl.BlockSpec(memory_space=pltpu.MemorySpace.VMEM)  # whole array in VMEM
    return pl.pallas_call(
        lstm_classifier_kernel,
        out_shape=jax.ShapeDtypeStruct((B, C), jnp.float32),
        in_specs=[vmem] * 8,
        out_specs=vmem,
    )(
        x,
        params["w_ih_t"],
        params["w_hh_t"],
        params["bias"],
        params["fc1_w_t"],
        params["fc1_b"],
        params["fc2_w_t"],
        params["fc2_b"],
    )


def init_params(key, input_dim=8, hidden_dim=64, fc_hidden=32, num_classes=3):
    """Deterministic init matching PyTorch's U(-1/sqrt(fan), 1/sqrt(fan)) ranges."""
    ks = jax.random.split(key, 10)
    H, D = hidden_dim, input_dim
    s_lstm = 1.0 / jnp.sqrt(H)
    s_fc1 = 1.0 / jnp.sqrt(H)
    s_fc2 = 1.0 / jnp.sqrt(fc_hidden)

    w_ih = jax.random.uniform(ks[0], (4 * H, D), jnp.float32, -s_lstm, s_lstm)
    w_hh = jax.random.uniform(ks[1], (4 * H, H), jnp.float32, -s_lstm, s_lstm)
    b_ih = jax.random.uniform(ks[2], (4 * H,), jnp.float32, -s_lstm, s_lstm)
    b_hh = jax.random.uniform(ks[3], (4 * H,), jnp.float32, -s_lstm, s_lstm)
    fc1_w = jax.random.uniform(ks[4], (fc_hidden, H), jnp.float32, -s_fc1, s_fc1)
    fc1_b = jax.random.uniform(ks[5], (fc_hidden,), jnp.float32, -s_fc1, s_fc1)
    fc2_w = jax.random.uniform(ks[6], (num_classes, fc_hidden), jnp.float32, -s_fc2, s_fc2)
    fc2_b = jax.random.uniform(ks[7], (num_classes,), jnp.float32, -s_fc2, s_fc2)

    return {
        "w_ih_t": w_ih.T,                       # (D, 4H)
        "w_hh_t": w_hh.T,                       # (H, 4H)
        "bias": (b_ih + b_hh)[None, :],         # (1, 4H)
        "fc1_w_t": fc1_w.T,                     # (H, 32)
        "fc1_b": fc1_b[None, :],                # (1, 32)
        "fc2_w_t": fc2_w.T,                     # (32, C)
        "fc2_b": fc2_b[None, :],                # (1, C)
    }


def reference_forward(x, params):
    """Pure-JAX reference replicating PyTorch LSTMClassifier.forward."""
    B, T, D = x.shape
    H = params["w_hh_t"].shape[0]
    h = jnp.zeros((B, H), jnp.float32)
    c = jnp.zeros((B, H), jnp.float32)

    def step(carry, x_t):
        h, c = carry
        gates = x_t @ params["w_ih_t"] + h @ params["w_hh_t"] + params["bias"]
        i = jax.nn.sigmoid(gates[:, 0 * H:1 * H])
        f = jax.nn.sigmoid(gates[:, 1 * H:2 * H])
        g = jnp.tanh(gates[:, 2 * H:3 * H])
        o = jax.nn.sigmoid(gates[:, 3 * H:4 * H])
        c = f * c + i * g
        h = o * jnp.tanh(c)
        return (h, c), None

    (h, c), _ = jax.lax.scan(step, (h, c), jnp.transpose(x, (1, 0, 2)))
    z = jnp.maximum(h, 0.0)
    z = jnp.maximum(z @ params["fc1_w_t"] + params["fc1_b"], 0.0)
    return z @ params["fc2_w_t"] + params["fc2_b"]


if __name__ == "__main__":
    key = jax.random.PRNGKey(0)
    k_x, k_p = jax.random.split(key)

    B, T, D, H, C = 2, 8, 8, 64, 3
    x = jax.random.normal(k_x, (B, T, D), jnp.float32)
    params = init_params(k_p, input_dim=D, hidden_dim=H, fc_hidden=32, num_classes=C)

    out = lstm_classifier_forward(x, params)
    out = jax.block_until_ready(out)

    ref = reference_forward(x, params)
    assert out.shape == (B, C), out.shape
    assert jnp.allclose(out, ref, atol=1e-5, rtol=1e-5), (out, ref)

    print("KERNEL_OK")
</pallas_src>

<mosaic_0001>
module attributes {stable_mosaic.version = 11 : i64} {
  func.func @lstm_classifier_kernel(%arg0: memref<2x8x8xf32, #tpu.memory_space<vmem>>, %arg1: memref<8x256xf32, #tpu.memory_space<vmem>>, %arg2: memref<64x256xf32, #tpu.memory_space<vmem>>, %arg3: memref<1x256xf32, #tpu.memory_space<vmem>>, %arg4: memref<64x32xf32, #tpu.memory_space<vmem>>, %arg5: memref<1x32xf32, #tpu.memory_space<vmem>>, %arg6: memref<32x3xf32, #tpu.memory_space<vmem>>, %arg7: memref<1x3xf32, #tpu.memory_space<vmem>>, %arg8: memref<2x3xf32, #tpu.memory_space<vmem>>) attributes {dimension_semantics = [], scalar_prefetch = 0 : i64, scratch_operands = 0 : i64, tpu.core_type = #tpu.core_type<tc>} {
    %c0 = arith.constant 0 : index
    %c0_0 = arith.constant 0 : index
    %c0_1 = arith.constant 0 : index
    %0 = vector.load %arg0[%c0, %c0_0, %c0_1] : memref<2x8x8xf32, #tpu.memory_space<vmem>>, vector<2x8x8xf32>
    %1 = vector.shape_cast %0 : vector<2x8x8xf32> to vector<16x8xf32>
    %c0_2 = arith.constant 0 : index
    %c0_3 = arith.constant 0 : index
    %2 = vector.load %arg1[%c0_2, %c0_3] : memref<8x256xf32, #tpu.memory_space<vmem>>, vector<8x256xf32>
    %cst = arith.constant dense<0.000000e+00> : vector<16x256xf32>
    %3 = tpu.matmul %1, %2, %cst {dimension_numbers = #tpu.dot_dimension_numbers<[1], [0], [0], [1], [0, 0, 1, 1], [], []>} : vector<16x8xf32>, vector<8x256xf32>, vector<16x256xf32> -> vector<16x256xf32>
    %c0_4 = arith.constant 0 : index
    %c0_5 = arith.constant 0 : index
    %4 = vector.load %arg3[%c0_4, %c0_5] : memref<1x256xf32, #tpu.memory_space<vmem>>, vector<1x256xf32>
    %5 = vector.broadcast %4 : vector<1x256xf32> to vector<16x256xf32>
    %6 = arith.addf %3, %5 : vector<16x256xf32>
    %7 = vector.shape_cast %6 : vector<16x256xf32> to vector<2x8x256xf32>
    %c0_6 = arith.constant 0 : index
    %c0_7 = arith.constant 0 : index
    %8 = vector.load %arg2[%c0_6, %c0_7] : memref<64x256xf32, #tpu.memory_space<vmem>>, vector<64x256xf32>
    %cst_8 = arith.constant 0.000000e+00 : f32
    %9 = vector.broadcast %cst_8 : f32 to vector<2x64xf32>
    %cst_9 = arith.constant 0.000000e+00 : f32
    %10 = vector.broadcast %cst_9 : f32 to vector<2x64xf32>
    %11 = vector.extract_strided_slice %7 {offsets = [0, 0, 0], sizes = [2, 1, 256], strides = [1, 1, 1]} : vector<2x8x256xf32> to vector<2x1x256xf32>
    %12 = vector.shape_cast %11 : vector<2x1x256xf32> to vector<2x256xf32>
    %cst_10 = arith.constant dense<0.000000e+00> : vector<2x256xf32>
    %13 = tpu.matmul %9, %8, %cst_10 {dimension_numbers = #tpu.dot_dimension_numbers<[1], [0], [0], [1], [0, 0, 1, 1], [], []>} : vector<2x64xf32>, vector<64x256xf32>, vector<2x256xf32> -> vector<2x256xf32>
    %14 = arith.addf %12, %13 : vector<2x256xf32>
    %15 = arith.negf %14 : vector<2x256xf32>
    %16 = math.exp %15 : vector<2x256xf32>
    %cst_11 = arith.constant 1.000000e+00 : f32
    %17 = vector.broadcast %cst_11 : f32 to vector<2x256xf32>
    %18 = arith.addf %17, %16 : vector<2x256xf32>
    %19 = arith.divf %17, %18 : vector<2x256xf32>
    %20 = math.tanh %14 : vector<2x256xf32>
    %21 = vector.extract_strided_slice %19 {offsets = [0, 0], sizes = [2, 64], strides = [1, 1]} : vector<2x256xf32> to vector<2x64xf32>
    %22 = vector.extract_strided_slice %19 {offsets = [0, 64], sizes = [2, 64], strides = [1, 1]} : vector<2x256xf32> to vector<2x64xf32>
    %23 = vector.extract_strided_slice %20 {offsets = [0, 128], sizes = [2, 64], strides = [1, 1]} : vector<2x256xf32> to vector<2x64xf32>
    %24 = vector.extract_strided_slice %19 {offsets = [0, 192], sizes = [2, 64], strides = [1, 1]} : vector<2x256xf32> to vector<2x64xf32>
    %25 = arith.mulf %22, %10 : vector<2x64xf32>
    %26 = arith.mulf %21, %23 : vector<2x64xf32>
    %27 = arith.addf %25, %26 : vector<2x64xf32>
    %28 = math.tanh %27 : vector<2x64xf32>
    %29 = arith.mulf %24, %28 : vector<2x64xf32>
    %30 = vector.extract_strided_slice %7 {offsets = [0, 1, 0], sizes = [2, 1, 256], strides = [1, 1, 1]} : vector<2x8x256xf32> to vector<2x1x256xf32>
    %31 = vector.shape_cast %30 : vector<2x1x256xf32> to vector<2x256xf32>
    %cst_12 = arith.constant dense<0.000000e+00> : vector<2x256xf32>
    %32 = tpu.matmul %29, %8, %cst_12 {dimension_numbers = #tpu.dot_dimension_numbers<[1], [0], [0], [1], [0, 0, 1, 1], [], []>} : vector<2x64xf32>, vector<64x256xf32>, vector<2x256xf32> -> vector<2x256xf32>
    %33 = arith.addf %31, %32 : vector<2x256xf32>
    %34 = arith.negf %33 : vector<2x256xf32>
    %35 = math.exp %34 : vector<2x256xf32>
    %cst_13 = arith.constant 1.000000e+00 : f32
    %36 = vector.broadcast %cst_13 : f32 to vector<2x256xf32>
    %37 = arith.addf %36, %35 : vector<2x256xf32>
    %38 = arith.divf %36, %37 : vector<2x256xf32>
    %39 = math.tanh %33 : vector<2x256xf32>
    %40 = vector.extract_strided_slice %38 {offsets = [0, 0], sizes = [2, 64], strides = [1, 1]} : vector<2x256xf32> to vector<2x64xf32>
    %41 = vector.extract_strided_slice %38 {offsets = [0, 64], sizes = [2, 64], strides = [1, 1]} : vector<2x256xf32> to vector<2x64xf32>
    %42 = vector.extract_strided_slice %39 {offsets = [0, 128], sizes = [2, 64], strides = [1, 1]} : vector<2x256xf32> to vector<2x64xf32>
    %43 = vector.extract_strided_slice %38 {offsets = [0, 192], sizes = [2, 64], strides = [1, 1]} : vector<2x256xf32> to vector<2x64xf32>
    %44 = arith.mulf %41, %27 : vector<2x64xf32>
    %45 = arith.mulf %40, %42 : vector<2x64xf32>
    %46 = arith.addf %44, %45 : vector<2x64xf32>
    %47 = math.tanh %46 : vector<2x64xf32>
    %48 = arith.mulf %43, %47 : vector<2x64xf32>
    %49 = vector.extract_strided_slice %7 {offsets = [0, 2, 0], sizes = [2, 1, 256], strides = [1, 1, 1]} : vector<2x8x256xf32> to vector<2x1x256xf32>
    %50 = vector.shape_cast %49 : vector<2x1x256xf32> to vector<2x256xf32>
    %cst_14 = arith.constant dense<0.000000e+00> : vector<2x256xf32>
    %51 = tpu.matmul %48, %8, %cst_14 {dimension_numbers = #tpu.dot_dimension_numbers<[1], [0], [0], [1], [0, 0, 1, 1], [], []>} : vector<2x64xf32>, vector<64x256xf32>, vector<2x256xf32> -> vector<2x256xf32>
    %52 = arith.addf %50, %51 : vector<2x256xf32>
    %53 = arith.negf %52 : vector<2x256xf32>
    %54 = math.exp %53 : vector<2x256xf32>
    %cst_15 = arith.constant 1.000000e+00 : f32
    %55 = vector.broadcast %cst_15 : f32 to vector<2x256xf32>
    %56 = arith.addf %55, %54 : vector<2x256xf32>
    %57 = arith.divf %55, %56 : vector<2x256xf32>
    %58 = math.tanh %52 : vector<2x256xf32>
    %59 = vector.extract_strided_slice %57 {offsets = [0, 0], sizes = [2, 64], strides = [1, 1]} : vector<2x256xf32> to vector<2x64xf32>
    %60 = vector.extract_strided_slice %57 {offsets = [0, 64], sizes = [2, 64], strides = [1, 1]} : vector<2x256xf32> to vector<2x64xf32>
    %61 = vector.extract_strided_slice %58 {offsets = [0, 128], sizes = [2, 64], strides = [1, 1]} : vector<2x256xf32> to vector<2x64xf32>
    %62 = vector.extract_strided_slice %57 {offsets = [0, 192], sizes = [2, 64], strides = [1, 1]} : vector<2x256xf32> to vector<2x64xf32>
    %63 = arith.mulf %60, %46 : vector<2x64xf32>
    %64 = arith.mulf %59, %61 : vector<2x64xf32>
    %65 = arith.addf %63, %64 : vector<2x64xf32>
    %66 = math.tanh %65 : vector<2x64xf32>
    %67 = arith.mulf %62, %66 : vector<2x64xf32>
    %68 = vector.extract_strided_slice %7 {offsets = [0, 3, 0], sizes = [2, 1, 256], strides = [1, 1, 1]} : vector<2x8x256xf32> to vector<2x1x256xf32>
    %69 = vector.shape_cast %68 : vector<2x1x256xf32> to vector<2x256xf32>
    %cst_16 = arith.constant dense<0.000000e+00> : vector<2x256xf32>
    %70 = tpu.matmul %67, %8, %cst_16 {dimension_numbers = #tpu.dot_dimension_numbers<[1], [0], [0], [1], [0, 0, 1, 1], [], []>} : vector<2x64xf32>, vector<64x256xf32>, vector<2x256xf32> -> vector<2x256xf32>
    %71 = arith.addf %69, %70 : vector<2x256xf32>
    %72 = arith.negf %71 : vector<2x256xf32>
    %73 = math.exp %72 : vector<2x256xf32>
    %cst_17 = arith.constant 1.000000e+00 : f32
    %74 = vector.broadcast %cst_17 : f32 to vector<2x256xf32>
    %75 = arith.addf %74, %73 : vector<2x256xf32>
    %76 = arith.divf %74, %75 : vector<2x256xf32>
    %77 = math.tanh %71 : vector<2x256xf32>
    %78 = vector.extract_strided_slice %76 {offsets = [0, 0], sizes = [2, 64], strides = [1, 1]} : vector<2x256xf32> to vector<2x64xf32>
    %79 = vector.extract_strided_slice %76 {offsets = [0, 64], sizes = [2, 64], strides = [1, 1]} : vector<2x256xf32> to vector<2x64xf32>
    %80 = vector.extract_strided_slice %77 {offsets = [0, 128], sizes = [2, 64], strides = [1, 1]} : vector<2x256xf32> to vector<2x64xf32>
    %81 = vector.extract_strided_slice %76 {offsets = [0, 192], sizes = [2, 64], strides = [1, 1]} : vector<2x256xf32> to vector<2x64xf32>
    %82 = arith.mulf %79, %65 : vector<2x64xf32>
    %83 = arith.mulf %78, %80 : vector<2x64xf32>
    %84 = arith.addf %82, %83 : vector<2x64xf32>
    %85 = math.tanh %84 : vector<2x64xf32>
    %86 = arith.mulf %81, %85 : vector<2x64xf32>
    %87 = vector.extract_strided_slice %7 {offsets = [0, 4, 0], sizes = [2, 1, 256], strides = [1, 1, 1]} : vector<2x8x256xf32> to vector<2x1x256xf32>
    %88 = vector.shape_cast %87 : vector<2x1x256xf32> to vector<2x256xf32>
    %cst_18 = arith.constant dense<0.000000e+00> : vector<2x256xf32>
    %89 = tpu.matmul %86, %8, %cst_18 {dimension_numbers = #tpu.dot_dimension_numbers<[1], [0], [0], [1], [0, 0, 1, 1], [], []>} : vector<2x64xf32>, vector<64x256xf32>, vector<2x256xf32> -> vector<2x256xf32>
    %90 = arith.addf %88, %89 : vector<2x256xf32>
    %91 = arith.negf %90 : vector<2x256xf32>
    %92 = math.exp %91 : vector<2x256xf32>
    %cst_19 = arith.constant 1.000000e+00 : f32
    %93 = vector.broadcast %cst_19 : f32 to vector<2x256xf32>
    %94 = arith.addf %93, %92 : vector<2x256xf32>
    %95 = arith.divf %93, %94 : vector<2x256xf32>
    %96 = math.tanh %90 : vector<2x256xf32>
    %97 = vector.extract_strided_slice %95 {offsets = [0, 0], sizes = [2, 64], strides = [1, 1]} : vector<2x256xf32> to vector<2x64xf32>
    %98 = vector.extract_strided_slice %95 {offsets = [0, 64], sizes = [2, 64], strides = [1, 1]} : vector<2x256xf32> to vector<2x64xf32>
    %99 = vector.extract_strided_slice %96 {offsets = [0, 128], sizes = [2, 64], strides = [1, 1]} : vector<2x256xf32> to vector<2x64xf32>
    %100 = vector.extract_strided_slice %95 {offsets = [0, 192], sizes = [2, 64], strides = [1, 1]} : vector<2x256xf32> to vector<2x64xf32>
    %101 = arith.mulf %98, %84 : vector<2x64xf32>
    %102 = arith.mulf %97, %99 : vector<2x64xf32>
    %103 = arith.addf %101, %102 : vector<2x64xf32>
    %104 = math.tanh %103 : vector<2x64xf32>
    %105 = arith.mulf %100, %104 : vector<2x64xf32>
    %106 = vector.extract_strided_slice %7 {offsets = [0, 5, 0], sizes = [2, 1, 256], strides = [1, 1, 1]} : vector<2x8x256xf32> to vector<2x1x256xf32>
    %107 = vector.shape_cast %106 : vector<2x1x256xf32> to vector<2x256xf32>
    %cst_20 = arith.constant dense<0.000000e+00> : vector<2x256xf32>
    %108 = tpu.matmul %105, %8, %cst_20 {dimension_numbers = #tpu.dot_dimension_numbers<[1], [0], [0], [1], [0, 0, 1, 1], [], []>} : vector<2x64xf32>, vector<64x256xf32>, vector<2x256xf32> -> vector<2x256xf32>
    %109 = arith.addf %107, %108 : vector<2x256xf32>
    %110 = arith.negf %109 : vector<2x256xf32>
    %111 = math.exp %110 : vector<2x256xf32>
    %cst_21 = arith.constant 1.000000e+00 : f32
    %112 = vector.broadcast %cst_21 : f32 to vector<2x256xf32>
    %113 = arith.addf %112, %111 : vector<2x256xf32>
    %114 = arith.divf %112, %113 : vector<2x256xf32>
    %115 = math.tanh %109 : vector<2x256xf32>
    %116 = vector.extract_strided_slice %114 {offsets = [0, 0], sizes = [2, 64], strides = [1, 1]} : vector<2x256xf32> to vector<2x64xf32>
    %117 = vector.extract_strided_slice %114 {offsets = [0, 64], sizes = [2, 64], strides = [1, 1]} : vector<2x256xf32> to vector<2x64xf32>
    %118 = vector.extract_strided_slice %115 {offsets = [0, 128], sizes = [2, 64], strides = [1, 1]} : vector<2x256xf32> to vector<2x64xf32>
    %119 = vector.extract_strided_slice %114 {offsets = [0, 192], sizes = [2, 64], strides = [1, 1]} : vector<2x256xf32> to vector<2x64xf32>
    %120 = arith.mulf %117, %103 : vector<2x64xf32>
    %121 = arith.mulf %116, %118 : vector<2x64xf32>
    %122 = arith.addf %120, %121 : vector<2x64xf32>
    %123 = math.tanh %122 : vector<2x64xf32>
    %124 = arith.mulf %119, %123 : vector<2x64xf32>
    %125 = vector.extract_strided_slice %7 {offsets = [0, 6, 0], sizes = [2, 1, 256], strides = [1, 1, 1]} : vector<2x8x256xf32> to vector<2x1x256xf32>
    %126 = vector.shape_cast %125 : vector<2x1x256xf32> to vector<2x256xf32>
    %cst_22 = arith.constant dense<0.000000e+00> : vector<2x256xf32>
    %127 = tpu.matmul %124, %8, %cst_22 {dimension_numbers = #tpu.dot_dimension_numbers<[1], [0], [0], [1], [0, 0, 1, 1], [], []>} : vector<2x64xf32>, vector<64x256xf32>, vector<2x256xf32> -> vector<2x256xf32>
    %128 = arith.addf %126, %127 : vector<2x256xf32>
    %129 = arith.negf %128 : vector<2x256xf32>
    %130 = math.exp %129 : vector<2x256xf32>
    %cst_23 = arith.constant 1.000000e+00 : f32
    %131 = vector.broadcast %cst_23 : f32 to vector<2x256xf32>
    %132 = arith.addf %131, %130 : vector<2x256xf32>
    %133 = arith.divf %131, %132 : vector<2x256xf32>
    %134 = math.tanh %128 : vector<2x256xf32>
    %135 = vector.extract_strided_slice %133 {offsets = [0, 0], sizes = [2, 64], strides = [1, 1]} : vector<2x256xf32> to vector<2x64xf32>
    %136 = vector.extract_strided_slice %133 {offsets = [0, 64], sizes = [2, 64], strides = [1, 1]} : vector<2x256xf32> to vector<2x64xf32>
    %137 = vector.extract_strided_slice %134 {offsets = [0, 128], sizes = [2, 64], strides = [1, 1]} : vector<2x256xf32> to vector<2x64xf32>
    %138 = vector.extract_strided_slice %133 {offsets = [0, 192], sizes = [2, 64], strides = [1, 1]} : vector<2x256xf32> to vector<2x64xf32>
    %139 = arith.mulf %136, %122 : vector<2x64xf32>
    %140 = arith.mulf %135, %137 : vector<2x64xf32>
    %141 = arith.addf %139, %140 : vector<2x64xf32>
    %142 = math.tanh %141 : vector<2x64xf32>
    %143 = arith.mulf %138, %142 : vector<2x64xf32>
    %144 = vector.extract_strided_slice %7 {offsets = [0, 7, 0], sizes = [2, 1, 256], strides = [1, 1, 1]} : vector<2x8x256xf32> to vector<2x1x256xf32>
    %145 = vector.shape_cast %144 : vector<2x1x256xf32> to vector<2x256xf32>
    %cst_24 = arith.constant dense<0.000000e+00> : vector<2x256xf32>
    %146 = tpu.matmul %143, %8, %cst_24 {dimension_numbers = #tpu.dot_dimension_numbers<[1], [0], [0], [1], [0, 0, 1, 1], [], []>} : vector<2x64xf32>, vector<64x256xf32>, vector<2x256xf32> -> vector<2x256xf32>
    %147 = arith.addf %145, %146 : vector<2x256xf32>
    %148 = arith.negf %147 : vector<2x256xf32>
    %149 = math.exp %148 : vector<2x256xf32>
    %cst_25 = arith.constant 1.000000e+00 : f32
    %150 = vector.broadcast %cst_25 : f32 to vector<2x256xf32>
    %151 = arith.addf %150, %149 : vector<2x256xf32>
    %152 = arith.divf %150, %151 : vector<2x256xf32>
    %153 = math.tanh %147 : vector<2x256xf32>
    %154 = vector.extract_strided_slice %152 {offsets = [0, 0], sizes = [2, 64], strides = [1, 1]} : vector<2x256xf32> to vector<2x64xf32>
    %155 = vector.extract_strided_slice %152 {offsets = [0, 64], sizes = [2, 64], strides = [1, 1]} : vector<2x256xf32> to vector<2x64xf32>
    %156 = vector.extract_strided_slice %153 {offsets = [0, 128], sizes = [2, 64], strides = [1, 1]} : vector<2x256xf32> to vector<2x64xf32>
    %157 = vector.extract_strided_slice %152 {offsets = [0, 192], sizes = [2, 64], strides = [1, 1]} : vector<2x256xf32> to vector<2x64xf32>
    %158 = arith.mulf %155, %141 : vector<2x64xf32>
    %159 = arith.mulf %154, %156 : vector<2x64xf32>
    %160 = arith.addf %158, %159 : vector<2x64xf32>
    %161 = math.tanh %160 : vector<2x64xf32>
    %162 = arith.mulf %157, %161 : vector<2x64xf32>
    %cst_26 = arith.constant 0.000000e+00 : f32
    %163 = vector.broadcast %cst_26 : f32 to vector<2x64xf32>
    %164 = arith.maximumf %162, %163 : vector<2x64xf32>
    %c0_27 = arith.constant 0 : index
    %c0_28 = arith.constant 0 : index
    %165 = vector.load %arg4[%c0_27, %c0_28] : memref<64x32xf32, #tpu.memory_space<vmem>>, vector<64x32xf32>
    %cst_29 = arith.constant dense<0.000000e+00> : vector<2x32xf32>
    %166 = tpu.matmul %164, %165, %cst_29 {dimension_numbers = #tpu.dot_dimension_numbers<[1], [0], [0], [1], [0, 0, 1, 1], [], []>} : vector<2x64xf32>, vector<64x32xf32>, vector<2x32xf32> -> vector<2x32xf32>
    %c0_30 = arith.constant 0 : index
    %c0_31 = arith.constant 0 : index
    %167 = vector.load %arg5[%c0_30, %c0_31] : memref<1x32xf32, #tpu.memory_space<vmem>>, vector<1x32xf32>
    %168 = vector.broadcast %167 : vector<1x32xf32> to vector<2x32xf32>
    %169 = arith.addf %166, %168 : vector<2x32xf32>
    %cst_32 = arith.constant 0.000000e+00 : f32
    %170 = vector.broadcast %cst_32 : f32 to vector<2x32xf32>
    %171 = arith.maximumf %169, %170 : vector<2x32xf32>
    %c0_33 = arith.constant 0 : index
    %c0_34 = arith.constant 0 : index
    %172 = vector.load %arg6[%c0_33, %c0_34] : memref<32x3xf32, #tpu.memory_space<vmem>>, vector<32x3xf32>
    %cst_35 = arith.constant dense<0.000000e+00> : vector<2x3xf32>
    %173 = tpu.matmul %171, %172, %cst_35 {dimension_numbers = #tpu.dot_dimension_numbers<[1], [0], [0], [1], [0, 0, 1, 1], [], []>} : vector<2x32xf32>, vector<32x3xf32>, vector<2x3xf32> -> vector<2x3xf32>
    %c0_36 = arith.constant 0 : index
    %c0_37 = arith.constant 0 : index
    %174 = vector.load %arg7[%c0_36, %c0_37] : memref<1x3xf32, #tpu.memory_space<vmem>>, vector<1x3xf32>
    %175 = vector.broadcast %174 : vector<1x3xf32> to vector<2x3xf32>
    %176 = arith.addf %173, %175 : vector<2x3xf32>
    %c0_38 = arith.constant 0 : index
    %c0_39 = arith.constant 0 : index
    %177 = vector.load %arg8[%c0_38, %c0_39] : memref<2x3xf32, #tpu.memory_space<vmem>>, vector<2x3xf32>
    tpu.vector_store %arg8[%c0_38, %c0_39], %176 {strides = array<i32>} : memref<2x3xf32, #tpu.memory_space<vmem>>, vector<2x3xf32>,
    return
  }
}

</mosaic_0001>

<llo_original>
// kernel: lstm_classifier_forward.1
$region0: #{lstm_classifier_forward.1}
  #allocation0 [shape = 'u32[]', space=smem, size = 0x4, offset = 0x4, fixed_abs, tag = 'smem constant byte address 0x4 - core index']
  #allocation1 [shape = 'u32[144,128]{1,0:T(1,128)}', space=vmem, size = 0x12000, scoped, tag = 'internal scratch']
  %s0 = inlined_call_operand.vmem [shape: f32[2,8,8], index: 0, kind: input, shape index: {}]
  %s1 = inlined_call_operand.hbm [shape: f32[8,256], index: 1, kind: input, shape index: {}]
  %s2 = inlined_call_operand.vmem [shape: f32[64,256], index: 2, kind: input, shape index: {}]
  %s3 = inlined_call_operand.vmem [shape: f32[1,256], index: 3, kind: input, shape index: {}]
  %s4 = inlined_call_operand.vmem [shape: f32[64,32], index: 4, kind: input, shape index: {}]
  %s5 = inlined_call_operand.vmem [shape: f32[1,32], index: 5, kind: input, shape index: {}]
  %s6 = inlined_call_operand.vmem [shape: f32[32,3], index: 6, kind: input, shape index: {}]
  %s7 = inlined_call_operand.vmem [shape: f32[1,3], index: 7, kind: input, shape index: {}]
  %s8 = inlined_call_operand.hbm [shape: f32[2,3], index: 8, kind: output, shape index: {}]
  %s9 = sld [smem:[#allocation0]]
  $region46: #{lstm_classifier_forward.1} parent=0
    _
  %s11 = ssub.s32 1, %s9
  %s12 = scalar_select 0, %s11, %s9
  $region1: #{lstm_classifier_forward.1} parent=0
    #allocation2 [shape = 'u8[8192]{0}', space=vmem, size = 0x2000, scoped, tag = 'input window, operand 1, single buffered']
    #allocation3 [shape = 's32[1]{0}', space=sflag, size = 0x4, scoped, tag = 'scoped memory for lstm_classifier_forward.1']
    #allocation4 [shape = 's32[1]{0}', space=sflag, size = 0x4, scoped, tag = 'scoped memory for lstm_classifier_forward.1']
    #allocation5 [shape = 'u8[1024]{0}', space=vmem, size = 0x400, scoped, tag = 'output window, operand 0, single buffered']
    %13 = vsyncpa [#allocation3], 0
    %14 = vsyncpa [#allocation4], 0
    // Predicated region
    $region2: #{lstm_classifier_forward.1} parent=1 // pred_check
      _
    $region3: #{lstm_classifier_forward.1} parent=1 // pred_check_branch
      %16 = sbr.rel (0) target = $region5
    $region4: #{lstm_classifier_forward.1} parent=1 // pred_region
      _
    $region5: #{lstm_classifier_forward.1} parent=1 // pred_fallthru
      _
    // Predicated region
    $region6: #{lstm_classifier_forward.1} parent=1 // pred_check
      _
    $region7: #{lstm_classifier_forward.1} parent=1 // pred_check_branch
      %18 = sbr.rel (0) target = $region9
    $region8: #{lstm_classifier_forward.1} parent=1 // pred_region
      %s20 = ssub.s32 256, 256
      %21 = vsyncadd [#allocation3], %s20
      %s23 = sshll.u32 [#allocation2], 4
      %s24 = int_to_ptr.vmem [resolvable:$true] %s23
      %26 = dma.hbm_to_vmem [thread:$0]  %s1, 256, %s24, [#allocation3]
    $region9: #{lstm_classifier_forward.1} parent=1 // pred_fallthru
      _
    // Predicated region
    $region10: #{lstm_classifier_forward.1} parent=1 // pred_check
      _
    $region11: #{lstm_classifier_forward.1} parent=1 // pred_check_branch
      %28 = sbr.rel (0) target = $region13
    $region12: #{lstm_classifier_forward.1} parent=1 // pred_region
      _
    $region13: #{lstm_classifier_forward.1} parent=1 // pred_fallthru
      _
    // Predicated region
    $region14: #{lstm_classifier_forward.1} parent=1 // pred_check
      _
    $region15: #{lstm_classifier_forward.1} parent=1 // pred_check_branch
      %30 = sbr.rel (0) target = $region17
    $region16: #{lstm_classifier_forward.1} parent=1 // pred_region
      _
    $region17: #{lstm_classifier_forward.1} parent=1 // pred_fallthru
      _
    // Predicated region
    $region18: #{lstm_classifier_forward.1} parent=1 // pred_check
      _
    $region19: #{lstm_classifier_forward.1} parent=1 // pred_check_branch
      %32 = sbr.rel (0) target = $region21
    $region20: #{lstm_classifier_forward.1} parent=1 // pred_region
      _
    $region21: #{lstm_classifier_forward.1} parent=1 // pred_fallthru
      _
    // Predicated region
    $region22: #{lstm_classifier_forward.1} parent=1 // pred_check
      _
    $region23: #{lstm_classifier_forward.1} parent=1 // pred_check_branch
      %34 = sbr.rel (0) target = $region25
    $region24: #{lstm_classifier_forward.1} parent=1 // pred_region
      _
    $region25: #{lstm_classifier_forward.1} parent=1 // pred_fallthru
      _
    // Predicated region
    $region26: #{lstm_classifier_forward.1} parent=1 // pred_check
      _
    $region27: #{lstm_classifier_forward.1} parent=1 // pred_check_branch
      %36 = sbr.rel (0) target = $region29
    $region28: #{lstm_classifier_forward.1} parent=1 // pred_region
      _
    $region29: #{lstm_classifier_forward.1} parent=1 // pred_fallthru
      _
    // Predicated region
    $region30: #{lstm_classifier_forward.1} parent=1 // pred_check
      _
    $region31: #{lstm_classifier_forward.1} parent=1 // pred_check_branch
      %38 = sbr.rel (0) target = $region33
    $region32: #{lstm_classifier_forward.1} parent=1 // pred_region
      _
    $region33: #{lstm_classifier_forward.1} parent=1 // pred_fallthru
      _
    // Predicated region
    $region34: #{lstm_classifier_forward.1} parent=1 // pred_check
      _
    $region35: #{lstm_classifier_forward.1} parent=1 // pred_check_branch
      %40 = sbr.rel (0) target = $region37
    $region36: #{lstm_classifier_forward.1} parent=1 // pred_region
      %41 = dma.done [#allocation3], 256
    $region37: #{lstm_classifier_forward.1} parent=1 // pred_fallthru
      _
    %v42 = vld [vmem:[%s0] sm:$0xff]
    %v43 = vld [vmem:[%s0 + $0x8] sm:$0xff]
    %v44 = vld [vmem:[#allocation2] sm:$0xff]
    %v45 = vld [vmem:[#allocation2 + $0x8] sm:$0xff]
    %v46 = vld [vmem:[%s3] sm:$0x3]
    %v48 = vlaneseq
    %v49 = vshrl.u32 %v48, 7
    %v50 = vsub.s32 0, %v49
    %v51 = vrot.slane %v46, %v50
    %v52 = vlaneseq
    %v53 = vshrl.u32 %v52, 7
    %v54 = vsub.s32 1, %v53
    %v55 = vrot.slane %v46, %v54
    %vm58 = vcmask 64512
    %v60 = vsel %vm58, %v42, 0
    %v63 = vsel %vm58, %v43, 0
    %65 = vmatprep.subr.mxu0 %v45
    %66 = vmatpush1.msra.mxu0 %v44
    %67 = vmatprep.subr.mxu0 0.0
    %68 = vmatpush1.msra.mxu0 0.0
    %69 = vmatprep.subr.mxu0 0.0
    %70 = vmatpush1.msra.mxu0 0.0
    %71 = vmatprep.subr.mxu0 0.0
    %72 = vmatpush1.msra.mxu0 0.0
    %73 = vmatprep.subr.mxu0 0.0
    %74 = vmatpush1.msra.mxu0 0.0
    %75 = vmatprep.subr.mxu0 0.0
    %76 = vmatpush1.msra.mxu0 0.0
    %77 = vmatprep.subr.mxu0 0.0
    %78 = vmatpush1.msra.mxu0 0.0
    %79 = vmatprep.subr.mxu0 0.0
    %80 = vmatpush1.msra.mxu0 0.0
    %81 = vmatprep.subr.mxu0 0.0
    %82 = vmatpush1.msra.mxu0 0.0
    %83 = vmatprep.subr.mxu0 0.0
    %84 = vmatpush1.msra.mxu0 0.0
    %85 = vmatprep.subr.mxu0 0.0
    %86 = vmatpush1.msra.mxu0 0.0
    %87 = vmatprep.subr.mxu0 0.0
    %88 = vmatpush1.msra.mxu0 0.0
    %89 = vmatprep.subr.mxu0 0.0
    %90 = vmatpush1.msra.mxu0 0.0
    %91 = vmatprep.subr.mxu0 0.0
    %92 = vmatpush1.msra.mxu0 0.0
    %93 = vmatprep.subr.mxu0 0.0
    %94 = vmatpush1.msra.mxu0 0.0
    %95 = vmatprep.subr.mxu0 0.0
    %96 = vmatpush1.msra.mxu0 0.0
    %97 = vmatprep.subr.mxu0 0.0
    %98 = vmatpush1.msra.mxu0 0.0
    %99 = vmatprep.subr.mxu0 0.0
    %100 = vmatpush1.msra.mxu0 0.0
    %101 = vmatprep.subr.mxu0 0.0
    %102 = vmatpush1.msra.mxu0 0.0
    %103 = vmatprep.subr.mxu0 0.0
    %104 = vmatpush1.msra.mxu0 0.0
    %105 = vmatprep.subr.mxu0 0.0
    %106 = vmatpush1.msra.mxu0 0.0
    %107 = vmatprep.subr.mxu0 0.0
    %108 = vmatpush1.msra.mxu0 0.0
    %109 = vmatprep.subr.mxu0 0.0
    %110 = vmatpush1.msra.mxu0 0.0
    %111 = vmatprep.subr.mxu0 0.0
    %112 = vmatpush1.msra.mxu0 0.0
    %113 = vmatprep.subr.mxu0 0.0
    %114 = vmatpush1.msra.mxu0 0.0
    %115 = vmatprep.subr.mxu0 0.0
    %116 = vmatpush1.msra.mxu0 0.0
    %117 = vmatprep.subr.mxu0 0.0
    %118 = vmatpush1.msra.mxu0 0.0
    %119 = vmatprep.subr.mxu0 0.0
    %120 = vmatpush1.msra.mxu0 0.0
    %121 = vmatprep.subr.mxu0 0.0
    %122 = vmatpush1.msra.mxu0 0.0
    %123 = vmatprep.subr.mxu0 0.0
    %124 = vmatpush1.msra.mxu0 0.0
    %125 = vmatprep.subr.mxu0 0.0
    %126 = vmatpush1.msra.mxu0 0.0
    %127 = vmatprep.subr.mxu0 0.0
    %128 = vmatpush1.msra.mxu0 0.0
    %129 = vmatprep.mubr.f32.mxu0 0.0
    %130 = vmatmul.mubr.f32.gmra.mrb[0].mxu0 %v60
    %v131 = vpop.f32.mrb[0].mxu0
    %v132 = vadd.f32 %v51, %v131
    %v133 = vpop.f32.mrb[0].mxu0
    %v134 = vadd.f32 %v55, %v133
    %135 = vmatprep.mubr.f32.mxu0 0.0
    %136 = vmatmul.mubr.f32.gmra.mrb[0].mxu0 %v63
    %v137 = vpop.f32.mrb[0].mxu0
    %v138 = vadd.f32 %v51, %v137
    %v139 = vpop.f32.mrb[0].mxu0
    %v140 = vadd.f32 %v55, %v139
    %141 = vdwg.mxu0
    %v142 = vld [vmem:[%s2] sm:$0xff]
    %v143 = vld [vmem:[%s2 + $0x8] sm:$0xff]
    %v144 = vld [vmem:[%s2 + $0x10] sm:$0xff]
    %v145 = vld [vmem:[%s2 + $0x18] sm:$0xff]
    %v146 = vld [vmem:[%s2 + $0x20] sm:$0xff]
    %v147 = vld [vmem:[%s2 + $0x28] sm:$0xff]
    %v148 = vld [vmem:[%s2 + $0x30] sm:$0xff]
    %v149 = vld [vmem:[%s2 + $0x38] sm:$0xff]
    %v150 = vld [vmem:[%s2 + $0x40] sm:$0xff]
    %v151 = vld [vmem:[%s2 + $0x48] sm:$0xff]
    %v152 = vld [vmem:[%s2 + $0x50] sm:$0xff]
    %v153 = vld [vmem:[%s2 + $0x58] sm:$0xff]
    %v154 = vld [vmem:[%s2 + $0x60] sm:$0xff]
    %v155 = vld [vmem:[%s2 + $0x68] sm:$0xff]
    %v156 = vld [vmem:[%s2 + $0x70] sm:$0xff]
    %v157 = vld [vmem:[%s2 + $0x78] sm:$0xff]
    %vm158 = vcmask 523264
    %v160 = vsel %vm158, 0.0, 0
    %162 = vmatprep.subr.mxu0 %v143
    %163 = vmatpush1.msra.mxu0 %v142
    %164 = vmatprep.subr.mxu0 %v145
    %165 = vmatpush1.msra.mxu0 %v144
    %166 = vmatprep.subr.mxu0 %v147
    %167 = vmatpush1.msra.mxu0 %v146
    %168 = vmatprep.subr.mxu0 %v149
    %169 = vmatpush1.msra.mxu0 %v148
    %170 = vmatprep.subr.mxu0 %v151
    %171 = vmatpush1.msra.mxu0 %v150
    %172 = vmatprep.subr.mxu0 %v153
    %173 = vmatpush1.msra.mxu0 %v152
    %174 = vmatprep.subr.mxu0 %v155
    %175 = vmatpush1.msra.mxu0 %v154
    %176 = vmatprep.subr.mxu0 %v157
    %177 = vmatpush1.msra.mxu0 %v156
    %178 = vmatprep.subr.mxu0 0.0
    %179 = vmatpush1.msra.mxu0 0.0
    %180 = vmatprep.subr.mxu0 0.0
    %181 = vmatpush1.msra.mxu0 0.0
    %182 = vmatprep.subr.mxu0 0.0
    %183 = vmatpush1.msra.mxu0 0.0
    %184 = vmatprep.subr.mxu0 0.0
    %185 = vmatpush1.msra.mxu0 0.0
    %186 = vmatprep.subr.mxu0 0.0
    %187 = vmatpush1.msra.mxu0 0.0
    %188 = vmatprep.subr.mxu0 0.0
    %189 = vmatpush1.msra.mxu0 0.0
    %190 = vmatprep.subr.mxu0 0.0
    %191 = vmatpush1.msra.mxu0 0.0
    %192 = vmatprep.subr.mxu0 0.0
    %193 = vmatpush1.msra.mxu0 0.0
    %194 = vmatprep.subr.mxu0 0.0
    %195 = vmatpush1.msra.mxu0 0.0
    %196 = vmatprep.subr.mxu0 0.0
    %197 = vmatpush1.msra.mxu0 0.0
    %198 = vmatprep.subr.mxu0 0.0
    %199 = vmatpush1.msra.mxu0 0.0
    %200 = vmatprep.subr.mxu0 0.0
    %201 = vmatpush1.msra.mxu0 0.0
    %202 = vmatprep.subr.mxu0 0.0
    %203 = vmatpush1.msra.mxu0 0.0
    %204 = vmatprep.subr.mxu0 0.0
    %205 = vmatpush1.msra.mxu0 0.0
    %206 = vmatprep.subr.mxu0 0.0
    %207 = vmatpush1.msra.mxu0 0.0
    %208 = vmatprep.subr.mxu0 0.0
    %209 = vmatpush1.msra.mxu0 0.0
    %210 = vmatprep.subr.mxu0 0.0
    %211 = vmatpush1.msra.mxu0 0.0
    %212 = vmatprep.subr.mxu0 0.0
    %213 = vmatpush1.msra.mxu0 0.0
    %214 = vmatprep.subr.mxu0 0.0
    %215 = vmatpush1.msra.mxu0 0.0
    %216 = vmatprep.subr.mxu0 0.0
    %217 = vmatpush1.msra.mxu0 0.0
    %218 = vmatprep.subr.mxu0 0.0
    %219 = vmatpush1.msra.mxu0 0.0
    %220 = vmatprep.subr.mxu0 0.0
    %221 = vmatpush1.msra.mxu0 0.0
    %222 = vmatprep.subr.mxu0 0.0
    %223 = vmatpush1.msra.mxu0 0.0
    %224 = vmatprep.subr.mxu0 0.0
    %225 = vmatpush1.msra.mxu0 0.0
    %226 = vmatprep.mubr.f32.mxu0 0.0
    %227 = vmatmul.mubr.f32.gmra.mrb[0].mxu0 %v160
    %v228 = vpop.f32.mrb[0].mxu0
    %v229 = vadd.f32 0.0, %v228
    %v230 = vpop.f32.mrb[0].mxu0
    %v231 = vadd.f32 0.0, %v230
    %232 = vdwg.mxu0
    %v235 = vrot.slane %v229, 1
    %v236 = vrot.slane %v231, 1
    %v241 = vadd.f32 %v132, %v229
    %v242 = vadd.f32 %v134, %v231
    %v243 = vadd.f32 %v138, %v235
    %v244 = vadd.f32 %v140, %v236
    %v245 = vxor.u32 %v241, 2147483648
    %v246 = vxor.u32 %v242, 2147483648
    %v247 = vxor.u32 %v243, 2147483648
    %v248 = vxor.u32 %v244, 2147483648
    %v249 = vmul.f32 %v245, 1.442695
    %v250 = vpow.pop %v249
    %v251 = vmul.f32 %v246, 1.442695
    %v252 = vpow.pop %v251
    %v253 = vmul.f32 %v247, 1.442695
    %v254 = vpow.pop %v253
    %v255 = vmul.f32 %v248, 1.442695
    %v256 = vpow.pop %v255
    %v257 = vadd.f32 %v250, 1.0
    %v258 = vadd.f32 %v252, 1.0
    %v259 = vadd.f32 %v254, 1.0
    %v260 = vadd.f32 %v256, 1.0
    %v261 = vrcp.pop %v257
    %v262 = vmul.f32 1.0, %v261
    %v263 = vrcp.pop %v258
    %v264 = vmul.f32 1.0, %v263
    %v265 = vrcp.pop %v259
    %v266 = vmul.f32 1.0, %v265
    %v267 = vrcp.pop %v260
    %v268 = vmul.f32 1.0, %v267
    %v269 = vtanh.pop %v242
    %v270 = vtanh.pop %v244
    %v271 = vmul.f32 %v262, 0.0
    %v272 = vmul.f32 %v266, 0.0
    %v273 = vmul.f32 %v262, %v269
    %v274 = vmul.f32 %v266, %v270
    %277 = vrot.lane.b32.xlu0 %v273, 64
    %v278 = vpop.permute.xlu0 %277
    %279 = vrot.lane.b32.xlu0 %v274, 64
    %v280 = vpop.permute.xlu0 %279
    %v283 = vadd.f32 %v271, %v278
    %v284 = vadd.f32 %v272, %v280
    %v285 = vtanh.pop %v283
    %v286 = vtanh.pop %v284
    %v287 = vmul.f32 %v264, %v285
    %v288 = vmul.f32 %v268, %v286
    %v291 = vrot.slane %v288, 7
    %vm292 = vcmask 1041409
    %v293 = vsel %vm292, %v291, %v287
    %294 = vrot.lane.b32.xlu0 %v293, 64
    %v295 = vpop.permute.xlu0 %294
    %v296 = vsel %vm158, %v295, 0
    %298 = vmatprep.subr.mxu0 %v143
    %299 = vmatpush1.msra.mxu0 %v142
    %300 = vmatprep.subr.mxu0 %v145
    %301 = vmatpush1.msra.mxu0 %v144
    %302 = vmatprep.subr.mxu0 %v147
    %303 = vmatpush1.msra.mxu0 %v146
    %304 = vmatprep.subr.mxu0 %v149
    %305 = vmatpush1.msra.mxu0 %v148
    %306 = vmatprep.subr.mxu0 %v151
    %307 = vmatpush1.msra.mxu0 %v150
    %308 = vmatprep.subr.mxu0 %v153
    %309 = vmatpush1.msra.mxu0 %v152
    %310 = vmatprep.subr.mxu0 %v155
    %311 = vmatpush1.msra.mxu0 %v154
    %312 = vmatprep.subr.mxu0 %v157
    %313 = vmatpush1.msra.mxu0 %v156
    %314 = vmatprep.subr.mxu0 0.0
    %315 = vmatpush1.msra.mxu0 0.0
    %316 = vmatprep.subr.mxu0 0.0
    %317 = vmatpush1.msra.mxu0 0.0
    %318 = vmatprep.subr.mxu0 0.0
    %319 = vmatpush1.msra.mxu0 0.0
    %320 = vmatprep.subr.mxu0 0.0
    %321 = vmatpush1.msra.mxu0 0.0
    %322 = vmatprep.subr.mxu0 0.0
    %323 = vmatpush1.msra.mxu0 0.0
    %324 = vmatprep.subr.mxu0 0.0
    %325 = vmatpush1.msra.mxu0 0.0
    %326 = vmatprep.subr.mxu0 0.0
    %327 = vmatpush1.msra.mxu0 0.0
    %328 = vmatprep.subr.mxu0 0.0
    %329 = vmatpush1.msra.mxu0 0.0
    %330 = vmatprep.subr.mxu0 0.0
    %331 = vmatpush1.msra.mxu0 0.0
    %332 = vmatprep.subr.mxu0 0.0
    %333 = vmatpush1.msra.mxu0 0.0
    %334 = vmatprep.subr.mxu0 0.0
    %335 = vmatpush1.msra.mxu0 0.0
    %336 = vmatprep.subr.mxu0 0.0
    %337 = vmatpush1.msra.mxu0 0.0
    %338 = vmatprep.subr.mxu0 0.0
    %339 = vmatpush1.msra.mxu0 0.0
    %340 = vmatprep.subr.mxu0 0.0
    %341 = vmatpush1.msra.mxu0 0.0
    %342 = vmatprep.subr.mxu0 0.0
    %343 = vmatpush1.msra.mxu0 0.0
    %344 = vmatprep.subr.mxu0 0.0
    %345 = vmatpush1.msra.mxu0 0.0
    %346 = vmatprep.subr.mxu0 0.0
    %347 = vmatpush1.msra.mxu0 0.0
    %348 = vmatprep.subr.mxu0 0.0
    %349 = vmatpush1.msra.mxu0 0.0
    %350 = vmatprep.subr.mxu0 0.0
    %351 = vmatpush1.msra.mxu0 0.0
    %352 = vmatprep.subr.mxu0 0.0
    %353 = vmatpush1.msra.mxu0 0.0
    %354 = vmatprep.subr.mxu0 0.0
    %355 = vmatpush1.msra.mxu0 0.0
    %356 = vmatprep.subr.mxu0 0.0
    %357 = vmatpush1.msra.mxu0 0.0
    %358 = vmatprep.subr.mxu0 0.0
    %359 = vmatpush1.msra.mxu0 0.0
    %360 = vmatprep.subr.mxu0 0.0
    %361 = vmatpush1.msra.mxu0 0.0
    %362 = vmatprep.mubr.f32.mxu0 0.0
    %363 = vmatmul.mubr.f32.gmra.mrb[0].mxu0 %v296
    %v364 = vpop.f32.mrb[0].mxu0
    %v365 = vadd.f32 0.0, %v364
    %v366 = vpop.f32.mrb[0].mxu0
    %v367 = vadd.f32 0.0, %v366
    %368 = vdwg.mxu0
    %v371 = vrot.slane %v365, 7
    %v372 = vrot.slane %v367, 7
    %v377 = vadd.f32 %v132, %v371
    %v378 = vadd.f32 %v134, %v372
    %v379 = vadd.f32 %v138, %v365
    %v380 = vadd.f32 %v140, %v367
    %v381 = vxor.u32 %v377, 2147483648
    %v382 = vxor.u32 %v378, 2147483648
    %v383 = vxor.u32 %v379, 2147483648
    %v384 = vxor.u32 %v380, 2147483648
    %v385 = vmul.f32 %v381, 1.442695
    %v386 = vpow.pop %v385
    %v387 = vmul.f32 %v382, 1.442695
    %v388 = vpow.pop %v387
    %v389 = vmul.f32 %v383, 1.442695
    %v390 = vpow.pop %v389
    %v391 = vmul.f32 %v384, 1.442695
    %v392 = vpow.pop %v391
    %v393 = vadd.f32 %v386, 1.0
    %v394 = vadd.f32 %v388, 1.0
    %v395 = vadd.f32 %v390, 1.0
    %v396 = vadd.f32 %v392, 1.0
    %v397 = vrcp.pop %v393
    %v398 = vmul.f32 1.0, %v397
    %v399 = vrcp.pop %v394
    %v400 = vmul.f32 1.0, %v399
    %v401 = vrcp.pop %v395
    %v402 = vmul.f32 1.0, %v401
    %v403 = vrcp.pop %v396
    %v404 = vmul.f32 1.0, %v403
    %v405 = vtanh.pop %v378
    %v406 = vtanh.pop %v380
    %v409 = vrot.slane %v283, 7
    %v410 = vrot.slane %v284, 7
    %v413 = vmul.f32 %v398, %v409
    %v414 = vmul.f32 %v402, %v410
    %v415 = vmul.f32 %v398, %v405
    %v416 = vmul.f32 %v402, %v406
    %419 = vrot.lane.b32.xlu0 %v415, 64
    %v420 = vpop.permute.xlu0 %419
    %421 = vrot.lane.b32.xlu0 %v416, 64
    %v422 = vpop.permute.xlu0 %421
    %v425 = vadd.f32 %v413, %v420
    %v426 = vadd.f32 %v414, %v422
    %v427 = vtanh.pop %v425
    %v428 = vtanh.pop %v426
    %v429 = vmul.f32 %v400, %v427
    %v430 = vmul.f32 %v404, %v428
    %v433 = vrot.slane %v429, 1
    %v434 = vsel %vm292, %v430, %v433
    %435 = vrot.lane.b32.xlu0 %v434, 64
    %v436 = vpop.permute.xlu0 %435
    %v437 = vsel %vm158, %v436, 0
    %439 = vmatprep.subr.mxu0 %v143
    %440 = vmatpush1.msra.mxu0 %v142
    %441 = vmatprep.subr.mxu0 %v145
    %442 = vmatpush1.msra.mxu0 %v144
    %443 = vmatprep.subr.mxu0 %v147
    %444 = vmatpush1.msra.mxu0 %v146
    %445 = vmatprep.subr.mxu0 %v149
    %446 = vmatpush1.msra.mxu0 %v148
    %447 = vmatprep.subr.mxu0 %v151
    %448 = vmatpush1.msra.mxu0 %v150
    %449 = vmatprep.subr.mxu0 %v153
    %450 = vmatpush1.msra.mxu0 %v152
    %451 = vmatprep.subr.mxu0 %v155
    %452 = vmatpush1.msra.mxu0 %v154
    %453 = vmatprep.subr.mxu0 %v157
    %454 = vmatpush1.msra.mxu0 %v156
    %455 = vmatprep.subr.mxu0 0.0
    %456 = vmatpush1.msra.mxu0 0.0
    %457 = vmatprep.subr.mxu0 0.0
    %458 = vmatpush1.msra.mxu0 0.0
    %459 = vmatprep.subr.mxu0 0.0
    %460 = vmatpush1.msra.mxu0 0.0
    %461 = vmatprep.subr.mxu0 0.0
    %462 = vmatpush1.msra.mxu0 0.0
    %463 = vmatprep.subr.mxu0 0.0
    %464 = vmatpush1.msra.mxu0 0.0
    %465 = vmatprep.subr.mxu0 0.0
    %466 = vmatpush1.msra.mxu0 0.0
    %467 = vmatprep.subr.mxu0 0.0
    %468 = vmatpush1.msra.mxu0 0.0
    %469 = vmatprep.subr.mxu0 0.0
    %470 = vmatpush1.msra.mxu0 0.0
    %471 = vmatprep.subr.mxu0 0.0
    %472 = vmatpush1.msra.mxu0 0.0
    %473 = vmatprep.subr.mxu0 0.0
    %474 = vmatpush1.msra.mxu0 0.0
    %475 = vmatprep.subr.mxu0 0.0
    %476 = vmatpush1.msra.mxu0 0.0
    %477 = vmatprep.subr.mxu0 0.0
    %478 = vmatpush1.msra.mxu0 0.0
    %479 = vmatprep.subr.mxu0 0.0
    %480 = vmatpush1.msra.mxu0 0.0
    %481 = vmatprep.subr.mxu0 0.0
    %482 = vmatpush1.msra.mxu0 0.0
    %483 = vmatprep.subr.mxu0 0.0
    %484 = vmatpush1.msra.mxu0 0.0
    %485 = vmatprep.subr.mxu0 0.0
    %486 = vmatpush1.msra.mxu0 0.0
    %487 = vmatprep.subr.mxu0 0.0
    %488 = vmatpush1.msra.mxu0 0.0
    %489 = vmatprep.subr.mxu0 0.0
    %490 = vmatpush1.msra.mxu0 0.0
    %491 = vmatprep.subr.mxu0 0.0
    %492 = vmatpush1.msra.mxu0 0.0
    %493 = vmatprep.subr.mxu0 0.0
    %494 = vmatpush1.msra.mxu0 0.0
    %495 = vmatprep.subr.mxu0 0.0
    %496 = vmatpush1.msra.mxu0 0.0
    %497 = vmatprep.subr.mxu0 0.0
    %498 = vmatpush1.msra.mxu0 0.0
    %499 = vmatprep.subr.mxu0 0.0
    %500 = vmatpush1.msra.mxu0 0.0
    %501 = vmatprep.subr.mxu0 0.0
    %502 = vmatpush1.msra.mxu0 0.0
    %503 = vmatprep.mubr.f32.mxu0 0.0
    %504 = vmatmul.mubr.f32.gmra.mrb[0].mxu0 %v437
    %v505 = vpop.f32.mrb[0].mxu0
    %v506 = vadd.f32 0.0, %v505
    %v507 = vpop.f32.mrb[0].mxu0
    %v508 = vadd.f32 0.0, %v507
    %509 = vdwg.mxu0
    %v512 = vrot.slane %v506, 6
    %v513 = vrot.slane %v508, 6
    %v514 = vrot.slane %v506, 7
    %v515 = vrot.slane %v508, 7
    %v520 = vadd.f32 %v132, %v512
    %v521 = vadd.f32 %v134, %v513
    %v522 = vadd.f32 %v138, %v514
    %v523 = vadd.f32 %v140, %v515
    %v524 = vxor.u32 %v520, 2147483648
    %v525 = vxor.u32 %v521, 2147483648
    %v526 = vxor.u32 %v522, 2147483648
    %v527 = vxor.u32 %v523, 2147483648
    %v528 = vmul.f32 %v524, 1.442695
    %v529 = vpow.pop %v528
    %v530 = vmul.f32 %v525, 1.442695
    %v531 = vpow.pop %v530
    %v532 = vmul.f32 %v526, 1.442695
    %v533 = vpow.pop %v532
    %v534 = vmul.f32 %v527, 1.442695
    %v535 = vpow.pop %v534
    %v536 = vadd.f32 %v529, 1.0
    %v537 = vadd.f32 %v531, 1.0
    %v538 = vadd.f32 %v533, 1.0
    %v539 = vadd.f32 %v535, 1.0
    %v540 = vrcp.pop %v536
    %v541 = vmul.f32 1.0, %v540
    %v542 = vrcp.pop %v537
    %v543 = vmul.f32 1.0, %v542
    %v544 = vrcp.pop %v538
    %v545 = vmul.f32 1.0, %v544
    %v546 = vrcp.pop %v539
    %v547 = vmul.f32 1.0, %v546
    %v548 = vtanh.pop %v521
    %v549 = vtanh.pop %v523
    %v552 = vrot.slane %v425, 7
    %v553 = vrot.slane %v426, 7
    %v556 = vmul.f32 %v541, %v552
    %v557 = vmul.f32 %v545, %v553
    %v558 = vmul.f32 %v541, %v548
    %v559 = vmul.f32 %v545, %v549
    %562 = vrot.lane.b32.xlu0 %v558, 64
    %v563 = vpop.permute.xlu0 %562
    %564 = vrot.lane.b32.xlu0 %v559, 64
    %v565 = vpop.permute.xlu0 %564
    %v568 = vadd.f32 %v556, %v563
    %v569 = vadd.f32 %v557, %v565
    %v570 = vtanh.pop %v568
    %v571 = vtanh.pop %v569
    %v572 = vmul.f32 %v543, %v570
    %v573 = vmul.f32 %v547, %v571
    %v576 = vrot.slane %v572, 2
    %v577 = vrot.slane %v573, 1
    %v578 = vsel %vm292, %v577, %v576
    %579 = vrot.lane.b32.xlu0 %v578, 64
    %v580 = vpop.permute.xlu0 %579
    %v581 = vsel %vm158, %v580, 0
    %583 = vmatprep.subr.mxu0 %v143
    %584 = vmatpush1.msra.mxu0 %v142
    %585 = vmatprep.subr.mxu0 %v145
    %586 = vmatpush1.msra.mxu0 %v144
    %587 = vmatprep.subr.mxu0 %v147
    %588 = vmatpush1.msra.mxu0 %v146
    %589 = vmatprep.subr.mxu0 %v149
    %590 = vmatpush1.msra.mxu0 %v148
    %591 = vmatprep.subr.mxu0 %v151
    %592 = vmatpush1.msra.mxu0 %v150
    %593 = vmatprep.subr.mxu0 %v153
    %594 = vmatpush1.msra.mxu0 %v152
    %595 = vmatprep.subr.mxu0 %v155
    %596 = vmatpush1.msra.mxu0 %v154
    %597 = vmatprep.subr.mxu0 %v157
    %598 = vmatpush1.msra.mxu0 %v156
    %599 = vmatprep.subr.mxu0 0.0
    %600 = vmatpush1.msra.mxu0 0.0
    %601 = vmatprep.subr.mxu0 0.0
    %602 = vmatpush1.msra.mxu0 0.0
    %603 = vmatprep.subr.mxu0 0.0
    %604 = vmatpush1.msra.mxu0 0.0
    %605 = vmatprep.subr.mxu0 0.0
    %606 = vmatpush1.msra.mxu0 0.0
    %607 = vmatprep.subr.mxu0 0.0
    %608 = vmatpush1.msra.mxu0 0.0
    %609 = vmatprep.subr.mxu0 0.0
    %610 = vmatpush1.msra.mxu0 0.0
    %611 = vmatprep.subr.mxu0 0.0
    %612 = vmatpush1.msra.mxu0 0.0
    %613 = vmatprep.subr.mxu0 0.0
    %614 = vmatpush1.msra.mxu0 0.0
    %615 = vmatprep.subr.mxu0 0.0
    %616 = vmatpush1.msra.mxu0 0.0
    %617 = vmatprep.subr.mxu0 0.0
    %618 = vmatpush1.msra.mxu0 0.0
    %619 = vmatprep.subr.mxu0 0.0
    %620 = vmatpush1.msra.mxu0 0.0
    %621 = vmatprep.subr.mxu0 0.0
    %622 = vmatpush1.msra.mxu0 0.0
    %623 = vmatprep.subr.mxu0 0.0
    %624 = vmatpush1.msra.mxu0 0.0
    %625 = vmatprep.subr.mxu0 0.0
    %626 = vmatpush1.msra.mxu0 0.0
    %627 = vmatprep.subr.mxu0 0.0
    %628 = vmatpush1.msra.mxu0 0.0
    %629 = vmatprep.subr.mxu0 0.0
    %630 = vmatpush1.msra.mxu0 0.0
    %631 = vmatprep.subr.mxu0 0.0
    %632 = vmatpush1.msra.mxu0 0.0
    %633 = vmatprep.subr.mxu0 0.0
    %634 = vmatpush1.msra.mxu0 0.0
    %635 = vmatprep.subr.mxu0 0.0
    %636 = vmatpush1.msra.mxu0 0.0
    %637 = vmatprep.subr.mxu0 0.0
    %638 = vmatpush1.msra.mxu0 0.0
    %639 = vmatprep.subr.mxu0 0.0
    %640 = vmatpush1.msra.mxu0 0.0
    %641 = vmatprep.subr.mxu0 0.0
    %642 = vmatpush1.msra.mxu0 0.0
    %643 = vmatprep.subr.mxu0 0.0
    %644 = vmatpush1.msra.mxu0 0.0
    %645 = vmatprep.subr.mxu0 0.0
    %646 = vmatpush1.msra.mxu0 0.0
    %647 = vmatprep.mubr.f32.mxu0 0.0
    %648 = vmatmul.mubr.f32.gmra.mrb[0].mxu0 %v581
    %v649 = vpop.f32.mrb[0].mxu0
    %v650 = vadd.f32 0.0, %v649
    %v651 = vpop.f32.mrb[0].mxu0
    %v652 = vadd.f32 0.0, %v651
    %653 = vdwg.mxu0
    %v656 = vrot.slane %v650, 5
    %v657 = vrot.slane %v652, 5
    %v658 = vrot.slane %v650, 6
    %v659 = vrot.slane %v652, 6
    %v664 = vadd.f32 %v132, %v656
    %v665 = vadd.f32 %v134, %v657
    %v666 = vadd.f32 %v138, %v658
    %v667 = vadd.f32 %v140, %v659
    %v668 = vxor.u32 %v664, 2147483648
    %v669 = vxor.u32 %v665, 2147483648
    %v670 = vxor.u32 %v666, 2147483648
    %v671 = vxor.u32 %v667, 2147483648
    %v672 = vmul.f32 %v668, 1.442695
    %v673 = vpow.pop %v672
    %v674 = vmul.f32 %v669, 1.442695
    %v675 = vpow.pop %v674
    %v676 = vmul.f32 %v670, 1.442695
    %v677 = vpow.pop %v676
    %v678 = vmul.f32 %v671, 1.442695
    %v679 = vpow.pop %v678
    %v680 = vadd.f32 %v673, 1.0
    %v681 = vadd.f32 %v675, 1.0
    %v682 = vadd.f32 %v677, 1.0
    %v683 = vadd.f32 %v679, 1.0
    %v684 = vrcp.pop %v680
    %v685 = vmul.f32 1.0, %v684
    %v686 = vrcp.pop %v681
    %v687 = vmul.f32 1.0, %v686
    %v688 = vrcp.pop %v682
    %v689 = vmul.f32 1.0, %v688
    %v690 = vrcp.pop %v683
    %v691 = vmul.f32 1.0, %v690
    %v692 = vtanh.pop %v665
    %v693 = vtanh.pop %v667
    %v696 = vrot.slane %v568, 7
    %v697 = vrot.slane %v569, 7
    %v700 = vmul.f32 %v685, %v696
    %v701 = vmul.f32 %v689, %v697
    %v702 = vmul.f32 %v685, %v692
    %v703 = vmul.f32 %v689, %v693
    %706 = vrot.lane.b32.xlu0 %v702, 64
    %v707 = vpop.permute.xlu0 %706
    %708 = vrot.lane.b32.xlu0 %v703, 64
    %v709 = vpop.permute.xlu0 %708
    %v712 = vadd.f32 %v700, %v707
    %v713 = vadd.f32 %v701, %v709
    %v714 = vtanh.pop %v712
    %v715 = vtanh.pop %v713
    %v716 = vmul.f32 %v687, %v714
    %v717 = vmul.f32 %v691, %v715
    %v720 = vrot.slane %v716, 3
    %v721 = vrot.slane %v717, 2
    %v722 = vsel %vm292, %v721, %v720
    %723 = vrot.lane.b32.xlu0 %v722, 64
    %v724 = vpop.permute.xlu0 %723
    %v725 = vsel %vm158, %v724, 0
    %727 = vmatprep.subr.mxu0 %v143
    %728 = vmatpush1.msra.mxu0 %v142
    %729 = vmatprep.subr.mxu0 %v145
    %730 = vmatpush1.msra.mxu0 %v144
    %731 = vmatprep.subr.mxu0 %v147
    %732 = vmatpush1.msra.mxu0 %v146
    %733 = vmatprep.subr.mxu0 %v149
    %734 = vmatpush1.msra.mxu0 %v148
    %735 = vmatprep.subr.mxu0 %v151
    %736 = vmatpush1.msra.mxu0 %v150
    %737 = vmatprep.subr.mxu0 %v153
    %738 = vmatpush1.msra.mxu0 %v152
    %739 = vmatprep.subr.mxu0 %v155
    %740 = vmatpush1.msra.mxu0 %v154
    %741 = vmatprep.subr.mxu0 %v157
    %742 = vmatpush1.msra.mxu0 %v156
    %743 = vmatprep.subr.mxu0 0.0
    %744 = vmatpush1.msra.mxu0 0.0
    %745 = vmatprep.subr.mxu0 0.0
    %746 = vmatpush1.msra.mxu0 0.0
    %747 = vmatprep.subr.mxu0 0.0
    %748 = vmatpush1.msra.mxu0 0.0
    %749 = vmatprep.subr.mxu0 0.0
    %750 = vmatpush1.msra.mxu0 0.0
    %751 = vmatprep.subr.mxu0 0.0
    %752 = vmatpush1.msra.mxu0 0.0
    %753 = vmatprep.subr.mxu0 0.0
    %754 = vmatpush1.msra.mxu0 0.0
    %755 = vmatprep.subr.mxu0 0.0
    %756 = vmatpush1.msra.mxu0 0.0
    %757 = vmatprep.subr.mxu0 0.0
    %758 = vmatpush1.msra.mxu0 0.0
    %759 = vmatprep.subr.mxu0 0.0
    %760 = vmatpush1.msra.mxu0 0.0
    %761 = vmatprep.subr.mxu0 0.0
    %762 = vmatpush1.msra.mxu0 0.0
    %763 = vmatprep.subr.mxu0 0.0
    %764 = vmatpush1.msra.mxu0 0.0
    %765 = vmatprep.subr.mxu0 0.0
    %766 = vmatpush1.msra.mxu0 0.0
    %767 = vmatprep.subr.mxu0 0.0
    %768 = vmatpush1.msra.mxu0 0.0
    %769 = vmatprep.subr.mxu0 0.0
    %770 = vmatpush1.msra.mxu0 0.0
    %771 = vmatprep.subr.mxu0 0.0
    %772 = vmatpush1.msra.mxu0 0.0
    %773 = vmatprep.subr.mxu0 0.0
    %774 = vmatpush1.msra.mxu0 0.0
    %775 = vmatprep.subr.mxu0 0.0
    %776 = vmatpush1.msra.mxu0 0.0
    %777 = vmatprep.subr.mxu0 0.0
    %778 = vmatpush1.msra.mxu0 0.0
    %779 = vmatprep.subr.mxu0 0.0
    %780 = vmatpush1.msra.mxu0 0.0
    %781 = vmatprep.subr.mxu0 0.0
    %782 = vmatpush1.msra.mxu0 0.0
    %783 = vmatprep.subr.mxu0 0.0
    %784 = vmatpush1.msra.mxu0 0.0
    %785 = vmatprep.subr.mxu0 0.0
    %786 = vmatpush1.msra.mxu0 0.0
    %787 = vmatprep.subr.mxu0 0.0
    %788 = vmatpush1.msra.mxu0 0.0
    %789 = vmatprep.subr.mxu0 0.0
    %790 = vmatpush1.msra.mxu0 0.0
    %791 = vmatprep.mubr.f32.mxu0 0.0
    %792 = vmatmul.mubr.f32.gmra.mrb[0].mxu0 %v725
    %v793 = vpop.f32.mrb[0].mxu0
    %v794 = vadd.f32 0.0, %v793
    %v795 = vpop.f32.mrb[0].mxu0
    %v796 = vadd.f32 0.0, %v795
    %797 = vdwg.mxu0
    %v800 = vrot.slane %v794, 4
    %v801 = vrot.slane %v796, 4
    %v802 = vrot.slane %v794, 5
    %v803 = vrot.slane %v796, 5
    %v808 = vadd.f32 %v132, %v800
    %v809 = vadd.f32 %v134, %v801
    %v810 = vadd.f32 %v138, %v802
    %v811 = vadd.f32 %v140, %v803
    %v812 = vxor.u32 %v808, 2147483648
    %v813 = vxor.u32 %v809, 2147483648
    %v814 = vxor.u32 %v810, 2147483648
    %v815 = vxor.u32 %v811, 2147483648
    %v816 = vmul.f32 %v812, 1.442695
    %v817 = vpow.pop %v816
    %v818 = vmul.f32 %v813, 1.442695
    %v819 = vpow.pop %v818
    %v820 = vmul.f32 %v814, 1.442695
    %v821 = vpow.pop %v820
    %v822 = vmul.f32 %v815, 1.442695
    %v823 = vpow.pop %v822
    %v824 = vadd.f32 %v817, 1.0
    %v825 = vadd.f32 %v819, 1.0
    %v826 = vadd.f32 %v821, 1.0
    %v827 = vadd.f32 %v823, 1.0
    %v828 = vrcp.pop %v824
    %v829 = vmul.f32 1.0, %v828
    %v830 = vrcp.pop %v825
    %v831 = vmul.f32 1.0, %v830
    %v832 = vrcp.pop %v826
    %v833 = vmul.f32 1.0, %v832
    %v834 = vrcp.pop %v827
    %v835 = vmul.f32 1.0, %v834
    %v836 = vtanh.pop %v809
    %v837 = vtanh.pop %v811
    %v840 = vrot.slane %v712, 7
    %v841 = vrot.slane %v713, 7
    %v844 = vmul.f32 %v829, %v840
    %v845 = vmul.f32 %v833, %v841
    %v846 = vmul.f32 %v829, %v836
    %v847 = vmul.f32 %v833, %v837
    %850 = vrot.lane.b32.xlu0 %v846, 64
    %v851 = vpop.permute.xlu0 %850
    %852 = vrot.lane.b32.xlu0 %v847, 64
    %v853 = vpop.permute.xlu0 %852
    %v856 = vadd.f32 %v844, %v851
    %v857 = vadd.f32 %v845, %v853
    %v858 = vtanh.pop %v856
    %v859 = vtanh.pop %v857
    %v860 = vmul.f32 %v831, %v858
    %v861 = vmul.f32 %v835, %v859
    %v864 = vrot.slane %v860, 4
    %v865 = vrot.slane %v861, 3
    %v866 = vsel %vm292, %v865, %v864
    %867 = vrot.lane.b32.xlu0 %v866, 64
    %v868 = vpop.permute.xlu0 %867
    %v869 = vsel %vm158, %v868, 0
    %871 = vmatprep.subr.mxu0 %v143
    %872 = vmatpush1.msra.mxu0 %v142
    %873 = vmatprep.subr.mxu0 %v145
    %874 = vmatpush1.msra.mxu0 %v144
    %875 = vmatprep.subr.mxu0 %v147
    %876 = vmatpush1.msra.mxu0 %v146
    %877 = vmatprep.subr.mxu0 %v149
    %878 = vmatpush1.msra.mxu0 %v148
    %879 = vmatprep.subr.mxu0 %v151
    %880 = vmatpush1.msra.mxu0 %v150
    %881 = vmatprep.subr.mxu0 %v153
    %882 = vmatpush1.msra.mxu0 %v152
    %883 = vmatprep.subr.mxu0 %v155
    %884 = vmatpush1.msra.mxu0 %v154
    %885 = vmatprep.subr.mxu0 %v157
    %886 = vmatpush1.msra.mxu0 %v156
    %887 = vmatprep.subr.mxu0 0.0
    %888 = vmatpush1.msra.mxu0 0.0
    %889 = vmatprep.subr.mxu0 0.0
    %890 = vmatpush1.msra.mxu0 0.0
    %891 = vmatprep.subr.mxu0 0.0
    %892 = vmatpush1.msra.mxu0 0.0
    %893 = vmatprep.subr.mxu0 0.0
    %894 = vmatpush1.msra.mxu0 0.0
    %895 = vmatprep.subr.mxu0 0.0
    %896 = vmatpush1.msra.mxu0 0.0
    %897 = vmatprep.subr.mxu0 0.0
    %898 = vmatpush1.msra.mxu0 0.0
    %899 = vmatprep.subr.mxu0 0.0
    %900 = vmatpush1.msra.mxu0 0.0
    %901 = vmatprep.subr.mxu0 0.0
    %902 = vmatpush1.msra.mxu0 0.0
    %903 = vmatprep.subr.mxu0 0.0
    %904 = vmatpush1.msra.mxu0 0.0
    %905 = vmatprep.subr.mxu0 0.0
    %906 = vmatpush1.msra.mxu0 0.0
    %907 = vmatprep.subr.mxu0 0.0
    %908 = vmatpush1.msra.mxu0 0.0
    %909 = vmatprep.subr.mxu0 0.0
    %910 = vmatpush1.msra.mxu0 0.0
    %911 = vmatprep.subr.mxu0 0.0
    %912 = vmatpush1.msra.mxu0 0.0
    %913 = vmatprep.subr.mxu0 0.0
    %914 = vmatpush1.msra.mxu0 0.0
    %915 = vmatprep.subr.mxu0 0.0
    %916 = vmatpush1.msra.mxu0 0.0
    %917 = vmatprep.subr.mxu0 0.0
    %918 = vmatpush1.msra.mxu0 0.0
    %919 = vmatprep.subr.mxu0 0.0
    %920 = vmatpush1.msra.mxu0 0.0
    %921 = vmatprep.subr.mxu0 0.0
    %922 = vmatpush1.msra.mxu0 0.0
    %923 = vmatprep.subr.mxu0 0.0
    %924 = vmatpush1.msra.mxu0 0.0
    %925 = vmatprep.subr.mxu0 0.0
    %926 = vmatpush1.msra.mxu0 0.0
    %927 = vmatprep.subr.mxu0 0.0
    %928 = vmatpush1.msra.mxu0 0.0
    %929 = vmatprep.subr.mxu0 0.0
    %930 = vmatpush1.msra.mxu0 0.0
    %931 = vmatprep.subr.mxu0 0.0
    %932 = vmatpush1.msra.mxu0 0.0
    %933 = vmatprep.subr.mxu0 0.0
    %934 = vmatpush1.msra.mxu0 0.0
    %935 = vmatprep.mubr.f32.mxu0 0.0
    %936 = vmatmul.mubr.f32.gmra.mrb[0].mxu0 %v869
    %v937 = vpop.f32.mrb[0].mxu0
    %v938 = vadd.f32 0.0, %v937
    %v939 = vpop.f32.mrb[0].mxu0
    %v940 = vadd.f32 0.0, %v939
    %941 = vdwg.mxu0
    %v944 = vrot.slane %v938, 3
    %v945 = vrot.slane %v940, 3
    %v946 = vrot.slane %v938, 4
    %v947 = vrot.slane %v940, 4
    %v952 = vadd.f32 %v132, %v944
    %v953 = vadd.f32 %v134, %v945
    %v954 = vadd.f32 %v138, %v946
    %v955 = vadd.f32 %v140, %v947
    %v956 = vxor.u32 %v952, 2147483648
    %v957 = vxor.u32 %v953, 2147483648
    %v958 = vxor.u32 %v954, 2147483648
    %v959 = vxor.u32 %v955, 2147483648
    %v960 = vmul.f32 %v956, 1.442695
    %v961 = vpow.pop %v960
    %v962 = vmul.f32 %v957, 1.442695
    %v963 = vpow.pop %v962
    %v964 = vmul.f32 %v958, 1.442695
    %v965 = vpow.pop %v964
    %v966 = vmul.f32 %v959, 1.442695
    %v967 = vpow.pop %v966
    %v968 = vadd.f32 %v961, 1.0
    %v969 = vadd.f32 %v963, 1.0
    %v970 = vadd.f32 %v965, 1.0
    %v971 = vadd.f32 %v967, 1.0
    %v972 = vrcp.pop %v968
    %v973 = vmul.f32 1.0, %v972
    %v974 = vrcp.pop %v969
    %v975 = vmul.f32 1.0, %v974
    %v976 = vrcp.pop %v970
    %v977 = vmul.f32 1.0, %v976
    %v978 = vrcp.pop %v971
    %v979 = vmul.f32 1.0, %v978
    %v980 = vtanh.pop %v953
    %v981 = vtanh.pop %v955
    %v984 = vrot.slane %v856, 7
    %v985 = vrot.slane %v857, 7
    %v988 = vmul.f32 %v973, %v984
    %v989 = vmul.f32 %v977, %v985
    %v990 = vmul.f32 %v973, %v980
    %v991 = vmul.f32 %v977, %v981
    %994 = vrot.lane.b32.xlu0 %v990, 64
    %v995 = vpop.permute.xlu0 %994
    %996 = vrot.lane.b32.xlu0 %v991, 64
    %v997 = vpop.permute.xlu0 %996
    %v1000 = vadd.f32 %v988, %v995
    %v1001 = vadd.f32 %v989, %v997
    %v1002 = vtanh.pop %v1000
    %v1003 = vtanh.pop %v1001
    %v1004 = vmul.f32 %v975, %v1002
    %v1005 = vmul.f32 %v979, %v1003
    %v1008 = vrot.slane %v1004, 5
    %v1009 = vrot.slane %v1005, 4
    %v1010 = vsel %vm292, %v1009, %v1008
    %1011 = vrot.lane.b32.xlu0 %v1010, 64
    %v1012 = vpop.permute.xlu0 %1011
    %v1013 = vsel %vm158, %v1012, 0
    %1015 = vmatprep.subr.mxu0 %v143
    %1016 = vmatpush1.msra.mxu0 %v142
    %1017 = vmatprep.subr.mxu0 %v145
    %1018 = vmatpush1.msra.mxu0 %v144
    %1019 = vmatprep.subr.mxu0 %v147
    %1020 = vmatpush1.msra.mxu0 %v146
    %1021 = vmatprep.subr.mxu0 %v149
    %1022 = vmatpush1.msra.mxu0 %v148
    %1023 = vmatprep.subr.mxu0 %v151
    %1024 = vmatpush1.msra.mxu0 %v150
    %1025 = vmatprep.subr.mxu0 %v153
    %1026 = vmatpush1.msra.mxu0 %v152
    %1027 = vmatprep.subr.mxu0 %v155
    %1028 = vmatpush1.msra.mxu0 %v154
    %1029 = vmatprep.subr.mxu0 %v157
    %1030 = vmatpush1.msra.mxu0 %v156
    %1031 = vmatprep.subr.mxu0 0.0
    %1032 = vmatpush1.msra.mxu0 0.0
    %1033 = vmatprep.subr.mxu0 0.0
    %1034 = vmatpush1.msra.mxu0 0.0
    %1035 = vmatprep.subr.mxu0 0.0
    %1036 = vmatpush1.msra.mxu0 0.0
    %1037 = vmatprep.subr.mxu0 0.0
    %1038 = vmatpush1.msra.mxu0 0.0
    %1039 = vmatprep.subr.mxu0 0.0
    %1040 = vmatpush1.msra.mxu0 0.0
    %1041 = vmatprep.subr.mxu0 0.0
    %1042 = vmatpush1.msra.mxu0 0.0
    %1043 = vmatprep.subr.mxu0 0.0
    %1044 = vmatpush1.msra.mxu0 0.0
    %1045 = vmatprep.subr.mxu0 0.0
    %1046 = vmatpush1.msra.mxu0 0.0
    %1047 = vmatprep.subr.mxu0 0.0
    %1048 = vmatpush1.msra.mxu0 0.0
    %1049 = vmatprep.subr.mxu0 0.0
    %1050 = vmatpush1.msra.mxu0 0.0
    %1051 = vmatprep.subr.mxu0 0.0
    %1052 = vmatpush1.msra.mxu0 0.0
    %1053 = vmatprep.subr.mxu0 0.0
    %1054 = vmatpush1.msra.mxu0 0.0
    %1055 = vmatprep.subr.mxu0 0.0
    %1056 = vmatpush1.msra.mxu0 0.0
    %1057 = vmatprep.subr.mxu0 0.0
    %1058 = vmatpush1.msra.mxu0 0.0
    %1059 = vmatprep.subr.mxu0 0.0
    %1060 = vmatpush1.msra.mxu0 0.0
    %1061 = vmatprep.subr.mxu0 0.0
    %1062 = vmatpush1.msra.mxu0 0.0
    %1063 = vmatprep.subr.mxu0 0.0
    %1064 = vmatpush1.msra.mxu0 0.0
    %1065 = vmatprep.subr.mxu0 0.0
    %1066 = vmatpush1.msra.mxu0 0.0
    %1067 = vmatprep.subr.mxu0 0.0
    %1068 = vmatpush1.msra.mxu0 0.0
    %1069 = vmatprep.subr.mxu0 0.0
    %1070 = vmatpush1.msra.mxu0 0.0
    %1071 = vmatprep.subr.mxu0 0.0
    %1072 = vmatpush1.msra.mxu0 0.0
    %1073 = vmatprep.subr.mxu0 0.0
    %1074 = vmatpush1.msra.mxu0 0.0
    %1075 = vmatprep.subr.mxu0 0.0
    %1076 = vmatpush1.msra.mxu0 0.0
    %1077 = vmatprep.subr.mxu0 0.0
    %1078 = vmatpush1.msra.mxu0 0.0
    %1079 = vmatprep.mubr.f32.mxu0 0.0
    %1080 = vmatmul.mubr.f32.gmra.mrb[0].mxu0 %v1013
    %v1081 = vpop.f32.mrb[0].mxu0
    %v1082 = vadd.f32 0.0, %v1081
    %v1083 = vpop.f32.mrb[0].mxu0
    %v1084 = vadd.f32 0.0, %v1083
    %1085 = vdwg.mxu0
    %v1088 = vrot.slane %v1082, 2
    %v1089 = vrot.slane %v1084, 2
    %v1090 = vrot.slane %v1082, 3
    %v1091 = vrot.slane %v1084, 3
    %v1096 = vadd.f32 %v132, %v1088
    %v1097 = vadd.f32 %v134, %v1089
    %v1098 = vadd.f32 %v138, %v1090
    %v1099 = vadd.f32 %v140, %v1091
    %v1100 = vxor.u32 %v1096, 2147483648
    %v1101 = vxor.u32 %v1097, 2147483648
    %v1102 = vxor.u32 %v1098, 2147483648
    %v1103 = vxor.u32 %v1099, 2147483648
    %v1104 = vmul.f32 %v1100, 1.442695
    %v1105 = vpow.pop %v1104
    %v1106 = vmul.f32 %v1101, 1.442695
    %v1107 = vpow.pop %v1106
    %v1108 = vmul.f32 %v1102, 1.442695
    %v1109 = vpow.pop %v1108
    %v1110 = vmul.f32 %v1103, 1.442695
    %v1111 = vpow.pop %v1110
    %v1112 = vadd.f32 %v1105, 1.0
    %v1113 = vadd.f32 %v1107, 1.0
    %v1114 = vadd.f32 %v1109, 1.0
    %v1115 = vadd.f32 %v1111, 1.0
    %v1116 = vrcp.pop %v1112
    %v1117 = vmul.f32 1.0, %v1116
    %v1118 = vrcp.pop %v1113
    %v1119 = vmul.f32 1.0, %v1118
    %v1120 = vrcp.pop %v1114
    %v1121 = vmul.f32 1.0, %v1120
    %v1122 = vrcp.pop %v1115
    %v1123 = vmul.f32 1.0, %v1122
    %v1124 = vtanh.pop %v1097
    %v1125 = vtanh.pop %v1099
    %v1128 = vrot.slane %v1000, 7
    %v1129 = vrot.slane %v1001, 7
    %v1132 = vmul.f32 %v1117, %v1128
    %v1133 = vmul.f32 %v1121, %v1129
    %v1134 = vmul.f32 %v1117, %v1124
    %v1135 = vmul.f32 %v1121, %v1125
    %1138 = vrot.lane.b32.xlu0 %v1134, 64
    %v1139 = vpop.permute.xlu0 %1138
    %1140 = vrot.lane.b32.xlu0 %v1135, 64
    %v1141 = vpop.permute.xlu0 %1140
    %v1144 = vadd.f32 %v1132, %v1139
    %v1145 = vadd.f32 %v1133, %v1141
    %v1146 = vtanh.pop %v1144
    %v1147 = vtanh.pop %v1145
    %v1148 = vmul.f32 %v1119, %v1146
    %v1149 = vmul.f32 %v1123, %v1147
    %v1152 = vrot.slane %v1148, 6
    %v1153 = vrot.slane %v1149, 5
    %v1154 = vsel %vm292, %v1153, %v1152
    %1155 = vrot.lane.b32.xlu0 %v1154, 64
    %v1156 = vpop.permute.xlu0 %1155
    %v1157 = vsel %vm158, %v1156, 0
    %1159 = vmatprep.subr.mxu0 %v143
    %1160 = vmatpush1.msra.mxu0 %v142
    %1161 = vmatprep.subr.mxu0 %v145
    %1162 = vmatpush1.msra.mxu0 %v144
    %1163 = vmatprep.subr.mxu0 %v147
    %1164 = vmatpush1.msra.mxu0 %v146
    %1165 = vmatprep.subr.mxu0 %v149
    %1166 = vmatpush1.msra.mxu0 %v148
    %1167 = vmatprep.subr.mxu0 %v151
    %1168 = vmatpush1.msra.mxu0 %v150
    %1169 = vmatprep.subr.mxu0 %v153
    %1170 = vmatpush1.msra.mxu0 %v152
    %1171 = vmatprep.subr.mxu0 %v155
    %1172 = vmatpush1.msra.mxu0 %v154
    %1173 = vmatprep.subr.mxu0 %v157
    %1174 = vmatpush1.msra.mxu0 %v156
    %1175 = vmatprep.subr.mxu0 0.0
    %1176 = vmatpush1.msra.mxu0 0.0
    %1177 = vmatprep.subr.mxu0 0.0
    %1178 = vmatpush1.msra.mxu0 0.0
    %1179 = vmatprep.subr.mxu0 0.0
    %1180 = vmatpush1.msra.mxu0 0.0
    %1181 = vmatprep.subr.mxu0 0.0
    %1182 = vmatpush1.msra.mxu0 0.0
    %1183 = vmatprep.subr.mxu0 0.0
    %1184 = vmatpush1.msra.mxu0 0.0
    %1185 = vmatprep.subr.mxu0 0.0
    %1186 = vmatpush1.msra.mxu0 0.0
    %1187 = vmatprep.subr.mxu0 0.0
    %1188 = vmatpush1.msra.mxu0 0.0
    %1189 = vmatprep.subr.mxu0 0.0
    %1190 = vmatpush1.msra.mxu0 0.0
    %1191 = vmatprep.subr.mxu0 0.0
    %1192 = vmatpush1.msra.mxu0 0.0
    %1193 = vmatprep.subr.mxu0 0.0
    %1194 = vmatpush1.msra.mxu0 0.0
    %1195 = vmatprep.subr.mxu0 0.0
    %1196 = vmatpush1.msra.mxu0 0.0
    %1197 = vmatprep.subr.mxu0 0.0
    %1198 = vmatpush1.msra.mxu0 0.0
    %1199 = vmatprep.subr.mxu0 0.0
    %1200 = vmatpush1.msra.mxu0 0.0
    %1201 = vmatprep.subr.mxu0 0.0
    %1202 = vmatpush1.msra.mxu0 0.0
    %1203 = vmatprep.subr.mxu0 0.0
    %1204 = vmatpush1.msra.mxu0 0.0
    %1205 = vmatprep.subr.mxu0 0.0
    %1206 = vmatpush1.msra.mxu0 0.0
    %1207 = vmatprep.subr.mxu0 0.0
    %1208 = vmatpush1.msra.mxu0 0.0
    %1209 = vmatprep.subr.mxu0 0.0
    %1210 = vmatpush1.msra.mxu0 0.0
    %1211 = vmatprep.subr.mxu0 0.0
    %1212 = vmatpush1.msra.mxu0 0.0
    %1213 = vmatprep.subr.mxu0 0.0
    %1214 = vmatpush1.msra.mxu0 0.0
    %1215 = vmatprep.subr.mxu0 0.0
    %1216 = vmatpush1.msra.mxu0 0.0
    %1217 = vmatprep.subr.mxu0 0.0
    %1218 = vmatpush1.msra.mxu0 0.0
    %1219 = vmatprep.subr.mxu0 0.0
    %1220 = vmatpush1.msra.mxu0 0.0
    %1221 = vmatprep.subr.mxu0 0.0
    %1222 = vmatpush1.msra.mxu0 0.0
    %1223 = vmatprep.mubr.f32.mxu0 0.0
    %1224 = vmatmul.mubr.f32.gmra.mrb[0].mxu0 %v1157
    %v1225 = vpop.f32.mrb[0].mxu0
    %v1226 = vadd.f32 0.0, %v1225
    %v1227 = vpop.f32.mrb[0].mxu0
    %v1228 = vadd.f32 0.0, %v1227
    %1229 = vdwg.mxu0
    %v1232 = vrot.slane %v1226, 1
    %v1233 = vrot.slane %v1228, 1
    %v1234 = vrot.slane %v1226, 2
    %v1235 = vrot.slane %v1228, 2
    %v1240 = vadd.f32 %v132, %v1232
    %v1241 = vadd.f32 %v134, %v1233
    %v1242 = vadd.f32 %v138, %v1234
    %v1243 = vadd.f32 %v140, %v1235
    %v1244 = vxor.u32 %v1240, 2147483648
    %v1245 = vxor.u32 %v1241, 2147483648
    %v1246 = vxor.u32 %v1242, 2147483648
    %v1247 = vxor.u32 %v1243, 2147483648
    %v1248 = vmul.f32 %v1244, 1.442695
    %v1249 = vpow.pop %v1248
    %v1250 = vmul.f32 %v1245, 1.442695
    %v1251 = vpow.pop %v1250
    %v1252 = vmul.f32 %v1246, 1.442695
    %v1253 = vpow.pop %v1252
    %v1254 = vmul.f32 %v1247, 1.442695
    %v1255 = vpow.pop %v1254
    %v1256 = vadd.f32 %v1249, 1.0
    %v1257 = vadd.f32 %v1251, 1.0
    %v1258 = vadd.f32 %v1253, 1.0
    %v1259 = vadd.f32 %v1255, 1.0
    %v1260 = vrcp.pop %v1256
    %v1261 = vmul.f32 1.0, %v1260
    %v1262 = vrcp.pop %v1257
    %v1263 = vmul.f32 1.0, %v1262
    %v1264 = vrcp.pop %v1258
    %v1265 = vmul.f32 1.0, %v1264
    %v1266 = vrcp.pop %v1259
    %v1267 = vmul.f32 1.0, %v1266
    %v1268 = vtanh.pop %v1241
    %v1269 = vtanh.pop %v1243
    %v1272 = vrot.slane %v1144, 7
    %v1273 = vrot.slane %v1145, 7
    %v1276 = vmul.f32 %v1261, %v1272
    %v1277 = vmul.f32 %v1265, %v1273
    %v1278 = vmul.f32 %v1261, %v1268
    %v1279 = vmul.f32 %v1265, %v1269
    %1282 = vrot.lane.b32.xlu0 %v1278, 64
    %v1283 = vpop.permute.xlu0 %1282
    %1284 = vrot.lane.b32.xlu0 %v1279, 64
    %v1285 = vpop.permute.xlu0 %1284
    %v1288 = vadd.f32 %v1276, %v1283
    %v1289 = vadd.f32 %v1277, %v1285
    %v1290 = vtanh.pop %v1288
    %v1291 = vtanh.pop %v1289
    %v1292 = vmul.f32 %v1263, %v1290
    %v1293 = vmul.f32 %v1267, %v1291
    %v1294 = vmax.f32 %v1292, 0.0
    %v1295 = vmax.f32 %v1293, 0.0
    %v1296 = vld [vmem:[%s4] sm:$0xff]
    %v1297 = vld [vmem:[%s4 + $0x8] sm:$0xff]
    %v1298 = vld [vmem:[%s4 + $0x10] sm:$0xff]
    %v1299 = vld [vmem:[%s4 + $0x18] sm:$0xff]
    %v1300 = vld [vmem:[%s4 + $0x20] sm:$0xff]
    %v1301 = vld [vmem:[%s4 + $0x28] sm:$0xff]
    %v1302 = vld [vmem:[%s4 + $0x30] sm:$0xff]
    %v1303 = vld [vmem:[%s4 + $0x38] sm:$0xff]
    %v1304 = vld [vmem:[%s5] sm:$0x1]
    %v1306 = vlaneseq
    %v1307 = vshrl.u32 %v1306, 7
    %v1308 = vsub.s32 0, %v1307
    %v1309 = vrot.slane %v1304, %v1308
    %v1313 = vrot.slane %v1294, 7
    %v1314 = vrot.slane %v1295, 6
    %v1315 = vsel %vm292, %v1314, %v1313
    %1316 = vrot.lane.b32.xlu0 %v1315, 64
    %v1317 = vpop.permute.xlu0 %1316
    %v1318 = vsel %vm158, %v1317, 0
    %1320 = vmatprep.subr.mxu0 0.0
    %1321 = vmatpush1.msra.mxu0 %v1296
    %1322 = vmatprep.subr.mxu0 0.0
    %1323 = vmatpush1.msra.mxu0 %v1297
    %1324 = vmatprep.subr.mxu0 0.0
    %1325 = vmatpush1.msra.mxu0 %v1298
    %1326 = vmatprep.subr.mxu0 0.0
    %1327 = vmatpush1.msra.mxu0 %v1299
    %1328 = vmatprep.subr.mxu0 0.0
    %1329 = vmatpush1.msra.mxu0 %v1300
    %1330 = vmatprep.subr.mxu0 0.0
    %1331 = vmatpush1.msra.mxu0 %v1301
    %1332 = vmatprep.subr.mxu0 0.0
    %1333 = vmatpush1.msra.mxu0 %v1302
    %1334 = vmatprep.subr.mxu0 0.0
    %1335 = vmatpush1.msra.mxu0 %v1303
    %1336 = vmatprep.subr.mxu0 0.0
    %1337 = vmatpush1.msra.mxu0 0.0
    %1338 = vmatprep.subr.mxu0 0.0
    %1339 = vmatpush1.msra.mxu0 0.0
    %1340 = vmatprep.subr.mxu0 0.0
    %1341 = vmatpush1.msra.mxu0 0.0
    %1342 = vmatprep.subr.mxu0 0.0
    %1343 = vmatpush1.msra.mxu0 0.0
    %1344 = vmatprep.subr.mxu0 0.0
    %1345 = vmatpush1.msra.mxu0 0.0
    %1346 = vmatprep.subr.mxu0 0.0
    %1347 = vmatpush1.msra.mxu0 0.0
    %1348 = vmatprep.subr.mxu0 0.0
    %1349 = vmatpush1.msra.mxu0 0.0
    %1350 = vmatprep.subr.mxu0 0.0
    %1351 = vmatpush1.msra.mxu0 0.0
    %1352 = vmatprep.subr.mxu0 0.0
    %1353 = vmatpush1.msra.mxu0 0.0
    %1354 = vmatprep.subr.mxu0 0.0
    %1355 = vmatpush1.msra.mxu0 0.0
    %1356 = vmatprep.subr.mxu0 0.0
    %1357 = vmatpush1.msra.mxu0 0.0
    %1358 = vmatprep.subr.mxu0 0.0
    %1359 = vmatpush1.msra.mxu0 0.0
    %1360 = vmatprep.subr.mxu0 0.0
    %1361 = vmatpush1.msra.mxu0 0.0
    %1362 = vmatprep.subr.mxu0 0.0
    %1363 = vmatpush1.msra.mxu0 0.0
    %1364 = vmatprep.subr.mxu0 0.0
    %1365 = vmatpush1.msra.mxu0 0.0
    %1366 = vmatprep.subr.mxu0 0.0
    %1367 = vmatpush1.msra.mxu0 0.0
    %1368 = vmatprep.subr.mxu0 0.0
    %1369 = vmatpush1.msra.mxu0 0.0
    %1370 = vmatprep.subr.mxu0 0.0
    %1371 = vmatpush1.msra.mxu0 0.0
    %1372 = vmatprep.subr.mxu0 0.0
    %1373 = vmatpush1.msra.mxu0 0.0
    %1374 = vmatprep.subr.mxu0 0.0
    %1375 = vmatpush1.msra.mxu0 0.0
    %1376 = vmatprep.subr.mxu0 0.0
    %1377 = vmatpush1.msra.mxu0 0.0
    %1378 = vmatprep.subr.mxu0 0.0
    %1379 = vmatpush1.msra.mxu0 0.0
    %1380 = vmatprep.subr.mxu0 0.0
    %1381 = vmatpush1.msra.mxu0 0.0
    %1382 = vmatprep.subr.mxu0 0.0
    %1383 = vmatpush1.msra.mxu0 0.0
    %1384 = vmatprep.mubr.f32.mxu0 0.0
    %1385 = vmatmul.mubr.f32.gmra.mrb[0].mxu0 %v1318
    %v1386 = vpop.f32.mrb[0].mxu0
    %v1387 = vadd.f32 %v1309, %v1386
    %v1388 = vpop.f32.mrb[0].mxu0
    %1389 = vdwg.mxu0
    %v1390 = vmax.f32 %v1387, 0.0
    %v1391 = vld [vmem:[%s6] sm:$0xff]
    %v1392 = vld [vmem:[%s6 + $0x8] sm:$0xff]
    %v1393 = vld [vmem:[%s6 + $0x10] sm:$0xff]
    %v1394 = vld [vmem:[%s6 + $0x18] sm:$0xff]
    %v1395 = vld [vmem:[%s7] sm:$0x1]
    %v1397 = vlaneseq
    %v1398 = vshrl.u32 %v1397, 7
    %v1399 = vsub.s32 0, %v1398
    %v1400 = vrot.slane %v1395, %v1399
    %vm1402 = vcmask 261120
    %v1404 = vsel %vm1402, %v1390, 0
    %1406 = vmatprep.subr.mxu0 0.0
    %1407 = vmatpush1.msra.mxu0 %v1391
    %1408 = vmatprep.subr.mxu0 0.0
    %1409 = vmatpush1.msra.mxu0 %v1392
    %1410 = vmatprep.subr.mxu0 0.0
    %1411 = vmatpush1.msra.mxu0 %v1393
    %1412 = vmatprep.subr.mxu0 0.0
    %1413 = vmatpush1.msra.mxu0 %v1394
    %1414 = vmatprep.subr.mxu0 0.0
    %1415 = vmatpush1.msra.mxu0 0.0
    %1416 = vmatprep.subr.mxu0 0.0
    %1417 = vmatpush1.msra.mxu0 0.0
    %1418 = vmatprep.subr.mxu0 0.0
    %1419 = vmatpush1.msra.mxu0 0.0
    %1420 = vmatprep.subr.mxu0 0.0
    %1421 = vmatpush1.msra.mxu0 0.0
    %1422 = vmatprep.subr.mxu0 0.0
    %1423 = vmatpush1.msra.mxu0 0.0
    %1424 = vmatprep.subr.mxu0 0.0
    %1425 = vmatpush1.msra.mxu0 0.0
    %1426 = vmatprep.subr.mxu0 0.0
    %1427 = vmatpush1.msra.mxu0 0.0
    %1428 = vmatprep.subr.mxu0 0.0
    %1429 = vmatpush1.msra.mxu0 0.0
    %1430 = vmatprep.subr.mxu0 0.0
    %1431 = vmatpush1.msra.mxu0 0.0
    %1432 = vmatprep.subr.mxu0 0.0
    %1433 = vmatpush1.msra.mxu0 0.0
    %1434 = vmatprep.subr.mxu0 0.0
    %1435 = vmatpush1.msra.mxu0 0.0
    %1436 = vmatprep.subr.mxu0 0.0
    %1437 = vmatpush1.msra.mxu0 0.0
    %1438 = vmatprep.subr.mxu0 0.0
    %1439 = vmatpush1.msra.mxu0 0.0
    %1440 = vmatprep.subr.mxu0 0.0
    %1441 = vmatpush1.msra.mxu0 0.0
    %1442 = vmatprep.subr.mxu0 0.0
    %1443 = vmatpush1.msra.mxu0 0.0
    %1444 = vmatprep.subr.mxu0 0.0
    %1445 = vmatpush1.msra.mxu0 0.0
    %1446 = vmatprep.subr.mxu0 0.0
    %1447 = vmatpush1.msra.mxu0 0.0
    %1448 = vmatprep.subr.mxu0 0.0
    %1449 = vmatpush1.msra.mxu0 0.0
    %1450 = vmatprep.subr.mxu0 0.0
    %1451 = vmatpush1.msra.mxu0 0.0
    %1452 = vmatprep.subr.mxu0 0.0
    %1453 = vmatpush1.msra.mxu0 0.0
    %1454 = vmatprep.subr.mxu0 0.0
    %1455 = vmatpush1.msra.mxu0 0.0
    %1456 = vmatprep.subr.mxu0 0.0
    %1457 = vmatpush1.msra.mxu0 0.0
    %1458 = vmatprep.subr.mxu0 0.0
    %1459 = vmatpush1.msra.mxu0 0.0
    %1460 = vmatprep.subr.mxu0 0.0
    %1461 = vmatpush1.msra.mxu0 0.0
    %1462 = vmatprep.subr.mxu0 0.0
    %1463 = vmatpush1.msra.mxu0 0.0
    %1464 = vmatprep.subr.mxu0 0.0
    %1465 = vmatpush1.msra.mxu0 0.0
    %1466 = vmatprep.subr.mxu0 0.0
    %1467 = vmatpush1.msra.mxu0 0.0
    %1468 = vmatprep.subr.mxu0 0.0
    %1469 = vmatpush1.msra.mxu0 0.0
    %1470 = vmatprep.mubr.f32.mxu0 0.0
    %1471 = vmatmul.mubr.f32.gmra.mrb[0].mxu0 %v1404
    %v1472 = vpop.f32.mrb[0].mxu0
    %v1473 = vadd.f32 %v1400, %v1472
    %v1474 = vpop.f32.mrb[0].mxu0
    %1475 = vdwg.mxu0
    %vm1476 = vcmask 17408
    %1477 = vst.msk [vmem:[#allocation5] sm:$0x3] %vm1476, %v1473
    // Predicated region
    $region38: #{lstm_classifier_forward.1} parent=1 // pred_check
      _
    $region39: #{lstm_classifier_forward.1} parent=1 // pred_check_branch
      %1479 = sbr.rel (0) target = $region41
    $region40: #{lstm_classifier_forward.1} parent=1 // pred_region
      %s1481 = ssub.s32 32, 32
      %1482 = vsyncadd [#allocation4], %s1481
      %s1484 = sshll.u32 [#allocation5], 4
      %s1485 = int_to_ptr.vmem [resolvable:$true] %s1484
      %1487 = dma.vmem_to_hbm [thread:$0]  %s1485, 32, %s8, [#allocation4]
    $region41: #{lstm_classifier_forward.1} parent=1 // pred_fallthru
      _
    // Predicated region
    $region42: #{lstm_classifier_forward.1} parent=1 // pred_check
      _
    $region43: #{lstm_classifier_forward.1} parent=1 // pred_check_branch
      %1489 = sbr.rel (0) target = $region45
    $region44: #{lstm_classifier_forward.1} parent=1 // pred_region
      %1490 = dma.done [#allocation4], 32
    $region45: #{lstm_classifier_forward.1} parent=1 // pred_fallthru
      _
    %1491 = vsyncpa [#allocation3], 1
    %1492 = vsyncpa [#allocation4], 1

</llo_original>
